<compile_context>
chip_gen: v7x
topology: tpu7x:2x2x1
jax: 0.10.0
libtpu: 0.0.40
codegen_flags: <defaults>
</compile_context>

<pallas_src>
import math
from functools import partial

import jax
import jax.numpy as jnp
from jax.experimental import pallas as pl
from jax.experimental.pallas import tpu as pltpu


# ----------------------------------------------------------------------------
# Kernel: one grid step = (one batch tile of whole sequences, one encoder layer)
# ----------------------------------------------------------------------------
def backbone_kernel(x_ref, w_in_ref, pe_ref, b_in_ref,
                    wqkv_ref, bqkv_ref, wo_ref, bo_ref,
                    g1_ref, be1_ref, w1_ref, b1_ref, w2_ref, b2_ref,
                    g2_ref, be2_ref,
                    o_ref, h_ref, attn_ref,
                    *, nhead, seqs_per_tile, seq):
    l = pl.program_id(1)
    D = pe_ref.shape[1]
    hd = D // nhead
    Bt = seqs_per_tile
    T = seq
    N = Bt * T
    eps = 1e-5

    # ---- stage 0 (first layer only): input_linear + positional encoding ----
    @pl.when(l == 0)
    def _():
        x = x_ref[...]                                                   # (N,F) bf16
        h0 = jnp.dot(x, w_in_ref[...], preferred_element_type=jnp.float32)
        add = pe_ref[...] + b_in_ref[...]                                # (T,D) f32
        h0 = h0.reshape(Bt, T, D) + add[None, :, :]                      # bcast over batch
        h_ref[...] = h0.reshape(N, D)

    h = h_ref[...]                                                       # (N,D) f32

    # ---- multi-head self-attention (1/sqrt(hd) pre-folded into Q cols) ----
    qkv = jnp.dot(h.astype(jnp.bfloat16), wqkv_ref[...],
                  preferred_element_type=jnp.float32) + bqkv_ref[...]    # (N,3D)
    qkv = qkv.astype(jnp.bfloat16)                                       # single cast

    # Per-head scores / attention*V (nhead is small, statically unrolled);
    # head outputs are packed into attn_ref so the output projection below is
    # one K=D matmul instead of nhead K=hd matmuls.
    for hh in range(nhead):
        q = qkv[:, hh * hd:(hh + 1) * hd].reshape(Bt, T, hd)
        k = qkv[:, D + hh * hd:D + (hh + 1) * hd].reshape(Bt, T, hd)
        v = qkv[:, 2 * D + hh * hd:2 * D + (hh + 1) * hd].reshape(Bt, T, hd)

        s = jnp.einsum('bqd,bkd->bqk', q, k,
                       preferred_element_type=jnp.float32)               # (Bt,T,T)
        s = s - jnp.max(s, axis=-1, keepdims=True)
        p = jnp.exp(s)
        p = p * pl.reciprocal(jnp.sum(p, axis=-1, keepdims=True), approx=True)

        oh = jnp.einsum('bqk,bkd->bqd', p.astype(jnp.bfloat16), v,
                        preferred_element_type=jnp.float32)              # (Bt,T,hd)
        attn_ref[:, hh * hd:(hh + 1) * hd] = oh.reshape(N, hd).astype(jnp.bfloat16)

    # concat(o_h) @ Wo as one (N,D)@(D,D) MXU matmul
    attn = jnp.dot(attn_ref[...], wo_ref[...],
                   preferred_element_type=jnp.float32) + bo_ref[...]     # (N,D)

    # ---- residual + LayerNorm 1 (post-norm) ----
    y = h + attn
    mu = jnp.mean(y, axis=-1, keepdims=True)
    var = jnp.mean((y - mu) ** 2, axis=-1, keepdims=True)
    y = (y - mu) * jax.lax.rsqrt(var + eps) * g1_ref[...] + be1_ref[...]

    # ---- feed-forward (ReLU) ----
    f = jnp.dot(y.astype(jnp.bfloat16), w1_ref[...],
                preferred_element_type=jnp.float32) + b1_ref[...]
    f = jnp.maximum(f, 0.0)
    f = jnp.dot(f.astype(jnp.bfloat16), w2_ref[...],
                preferred_element_type=jnp.float32) + b2_ref[...]

    # ---- residual + LayerNorm 2 ----
    z = y + f
    mu2 = jnp.mean(z, axis=-1, keepdims=True)
    var2 = jnp.mean((z - mu2) ** 2, axis=-1, keepdims=True)
    hn = (z - mu2) * jax.lax.rsqrt(var2 + eps) * g2_ref[...] + be2_ref[...]

    h_ref[...] = hn                                                      # carry to next layer

    @pl.when(l == pl.num_programs(1) - 1)
    def _():
        o_ref[...] = hn.astype(o_ref.dtype)


# ----------------------------------------------------------------------------
# Helpers
# ----------------------------------------------------------------------------
def make_positional_encoding(T, D):
    # Matches the reference PositionalEncoding for T <= max_len (no sqrt scale).
    pos = jnp.arange(T, dtype=jnp.float32)[:, None]
    div = jnp.exp(jnp.arange(0, D, 2, dtype=jnp.float32) * (-math.log(10000.0) / D))
    pe = jnp.zeros((T, D), dtype=jnp.float32)
    pe = pe.at[:, 0::2].set(jnp.sin(pos * div))
    pe = pe.at[:, 1::2].set(jnp.cos(pos * div))
    return pe


def _choose_seqs_per_tile(B, T, target_rows=256):
    # Whole sequences per batch tile; rows_per_tile must be a multiple of 8
    # (sublane) or equal the full row count; prefer >=256 rows for MXU depth.
    candidates = [s for s in range(1, B + 1)
                  if B % s == 0 and ((s * T) % 8 == 0 or s == B)]
    for s in candidates:
        if s * T >= target_rows:
            return s
    return candidates[0]


# ----------------------------------------------------------------------------
# Wrapper: weight prep + single pallas_call over a (batch_tile, layer) grid
# ----------------------------------------------------------------------------
def backbone_forward(x, params, *, nhead):
    B, T, Fdim = x.shape
    D = params['w_in'].shape[1]
    layers = params['layers']
    L = len(layers)
    hd = D // nhead
    Dff = layers[0]['w1'].shape[1]
    scale = 1.0 / math.sqrt(hd)

    seqs_per_tile = _choose_seqs_per_tile(B, T)
    rows = seqs_per_tile * T
    n_btiles = B // seqs_per_tile

    x2d = x.reshape(B * T, Fdim).astype(jnp.bfloat16)        # halve input DMA
    pe = make_positional_encoding(T, D)                       # (T, D) f32, NOT tiled over B
    b_in = params['b_in']                                     # (1, D) f32

    def stack(name):
        return jnp.stack([lp[name] for lp in layers])

    # fold 1/sqrt(hd) into the Q columns of the in-projection, then cast
    wqkv = stack('wqkv').at[:, :, :D].multiply(scale).astype(jnp.bfloat16)  # (L,D,3D)
    bqkv = stack('bqkv').at[:, :, :D].multiply(scale)                       # (L,1,3D)
    w_in = params['w_in'].astype(jnp.bfloat16)                              # (F,D)
    wo = stack('wo').astype(jnp.bfloat16)                                   # (L,D,D)
    bo = stack('bo')                                                        # (L,1,D)
    g1, be1 = stack('g1'), stack('be1')
    w1 = stack('w1').astype(jnp.bfloat16)                                   # (L,D,Dff)
    b1 = stack('b1')
    w2 = stack('w2').astype(jnp.bfloat16)                                   # (L,Dff,D)
    b2 = stack('b2')
    g2, be2 = stack('g2'), stack('be2')

    # ---- BlockSpecs ----
    def const_spec(arr):          # whole-array operand, same block every step
        nd = arr.ndim
        return pl.BlockSpec(arr.shape, lambda b, l, _nd=nd: (0,) * _nd)

    def layer_spec(arr):          # stream one layer slice per inner grid step
        nd = arr.ndim
        return pl.BlockSpec((None,) + arr.shape[1:],
                            lambda b, l, _nd=nd: (l,) + (0,) * (_nd - 1))

    in_specs = [
        pl.BlockSpec((rows, Fdim), lambda b, l: (b, 0)),      # x
        const_spec(w_in), const_spec(pe), const_spec(b_in),
        layer_spec(wqkv), layer_spec(bqkv), layer_spec(wo), layer_spec(bo),
        layer_spec(g1), layer_spec(be1), layer_spec(w1), layer_spec(b1),
        layer_spec(w2), layer_spec(b2), layer_spec(g2), layer_spec(be2),
    ]
    out_spec = pl.BlockSpec((rows, D), lambda b, l: (b, 0))   # resident across layer axis

    # ---- VMEM budget (resident buffers + headroom, capped for v7x 64 MiB) ----
    w_layer_bytes = 2 * (3 * D * D + D * D + 2 * D * Dff)     # bf16 weights per layer
    p_layer_bytes = 4 * (3 * D + 2 * D + Dff + 4 * D)         # f32 biases / LN per layer
    io_bytes = 2 * rows * Fdim * 2 + 2 * rows * D * 4         # dbl-buffered x / out blocks
    scratch_bytes = rows * D * (4 + 2)                        # h (f32) + attn (bf16) scratch
    act_bytes = rows * (3 * D * 6 + Dff * 6 + 8 * D)          # qkv / ffn / residual temps
    score_bytes = seqs_per_tile * nhead * T * T * 8           # score tensors
    vmem_bytes = int(2 * (w_layer_bytes + p_layer_bytes)      # double-buffered layer stream
                     + io_bytes + scratch_bytes + act_bytes + score_bytes
                     + (8 << 20))                             # compiler scratch headroom
    vmem_bytes = max(min(vmem_bytes, 56 << 20), 8 << 20)

    kern = partial(backbone_kernel, nhead=nhead, seqs_per_tile=seqs_per_tile, seq=T)
    out2d = pl.pallas_call(
        kern,
        out_shape=jax.ShapeDtypeStruct((B * T, D), jnp.float32),
        grid_spec=pltpu.PrefetchScalarGridSpec(
            num_scalar_prefetch=0,
            grid=(n_btiles, L),
            in_specs=in_specs,
            out_specs=out_spec,
            scratch_shapes=[pltpu.VMEM((rows, D), jnp.float32),    # h carry
                            pltpu.VMEM((rows, D), jnp.bfloat16)],  # packed head outputs
        ),
        compiler_params=pltpu.CompilerParams(
            dimension_semantics=("parallel", "arbitrary"),
            vmem_limit_bytes=vmem_bytes),
    )(x2d, w_in, pe, b_in, wqkv, bqkv, wo, bo,
      g1, be1, w1, b1, w2, b2, g2, be2)
    return out2d.reshape(B, T, D)


# ----------------------------------------------------------------------------
# Parameter construction (deterministic, synthetic; (in, out) weight layout)
# ----------------------------------------------------------------------------
def init_backbone_params(key, input_dim, d_model, dim_ff, num_layers):
    s = 0.05
    keys = jax.random.split(key, 2 + num_layers)
    p = {
        'w_in': s * jax.random.normal(keys[0], (input_dim, d_model), jnp.float32),
        'b_in': s * jax.random.normal(keys[1], (1, d_model), jnp.float32),
        'layers': [],
    }
    for l in range(num_layers):
        lk = jax.random.split(keys[2 + l], 8)
        p['layers'].append({
            'wqkv': s * jax.random.normal(lk[0], (d_model, 3 * d_model), jnp.float32),
            'bqkv': s * jax.random.normal(lk[1], (1, 3 * d_model), jnp.float32),
            'wo':   s * jax.random.normal(lk[2], (d_model, d_model), jnp.float32),
            'bo':   s * jax.random.normal(lk[3], (1, d_model), jnp.float32),
            'g1':   jnp.ones((1, d_model), jnp.float32),
            'be1':  jnp.zeros((1, d_model), jnp.float32),
            'w1':   s * jax.random.normal(lk[4], (d_model, dim_ff), jnp.float32),
            'b1':   s * jax.random.normal(lk[5], (1, dim_ff), jnp.float32),
            'w2':   s * jax.random.normal(lk[6], (dim_ff, d_model), jnp.float32),
            'b2':   s * jax.random.normal(lk[7], (1, d_model), jnp.float32),
            'g2':   jnp.ones((1, d_model), jnp.float32),
            'be2':  jnp.zeros((1, d_model), jnp.float32),
        })
    return p


# ----------------------------------------------------------------------------
# Main
# ----------------------------------------------------------------------------
if __name__ == "__main__":
    B, T = 2, 8
    input_dim = 16
    d_model = 32
    nhead = 4
    num_layers = 2
    dim_feedforward = 64
    # dropout = 0.0 -> identity

    key = jax.random.PRNGKey(0)
    kx, kp = jax.random.split(key)
    x = jax.random.normal(kx, (B, T, input_dim), jnp.float32)
    params = init_backbone_params(kp, input_dim, d_model, dim_feedforward, num_layers)

    fwd = jax.jit(backbone_forward, static_argnames=('nhead',))
    out = fwd(x, params, nhead=nhead)
    out = jax.block_until_ready(out)

    assert out.shape == (B, T, d_model), out.shape
    assert bool(jnp.all(jnp.isfinite(out)))
    print("KERNEL_OK")
</pallas_src>

<mosaic_0001>
module attributes {stable_mosaic.version = 11 : i64} {
  func.func @backbone_kernel(%arg0: i32, %arg1: i32, %arg2: memref<8x16xbf16, #tpu.memory_space<vmem>>, %arg3: memref<16x32xbf16, #tpu.memory_space<vmem>>, %arg4: memref<8x32xf32, #tpu.memory_space<vmem>>, %arg5: memref<1x32xf32, #tpu.memory_space<vmem>>, %arg6: memref<1x32x96xbf16, #tpu.memory_space<vmem>>, %arg7: memref<1x1x96xf32, #tpu.memory_space<vmem>>, %arg8: memref<1x32x32xbf16, #tpu.memory_space<vmem>>, %arg9: memref<1x1x32xf32, #tpu.memory_space<vmem>>, %arg10: memref<1x1x32xf32, #tpu.memory_space<vmem>>, %arg11: memref<1x1x32xf32, #tpu.memory_space<vmem>>, %arg12: memref<1x32x64xbf16, #tpu.memory_space<vmem>>, %arg13: memref<1x1x64xf32, #tpu.memory_space<vmem>>, %arg14: memref<1x64x32xbf16, #tpu.memory_space<vmem>>, %arg15: memref<1x1x32xf32, #tpu.memory_space<vmem>>, %arg16: memref<1x1x32xf32, #tpu.memory_space<vmem>>, %arg17: memref<1x1x32xf32, #tpu.memory_space<vmem>>, %arg18: memref<8x32xf32, #tpu.memory_space<vmem>>, %arg19: memref<8x32xf32, #tpu.memory_space<vmem>>, %arg20: memref<8x32xbf16, #tpu.memory_space<vmem>>) attributes {dimension_semantics = [#tpu.dimension_semantics<parallel>, #tpu.dimension_semantics<arbitrary>], iteration_bounds = array<i64: 2, 2>, scalar_prefetch = 0 : i64, scratch_operands = 2 : i64, tpu.core_type = #tpu.core_type<tc>, window_params = [{transform_indices = @transform_0, window_bounds = array<i64: 8, 16>}, {pipeline_mode = #tpu.pipeline_mode<synchronous>, transform_indices = @transform_1, window_bounds = array<i64: 16, 32>}, {pipeline_mode = #tpu.pipeline_mode<synchronous>, transform_indices = @transform_2, window_bounds = array<i64: 8, 32>}, {pipeline_mode = #tpu.pipeline_mode<synchronous>, transform_indices = @transform_3, window_bounds = array<i64: 1, 32>}, {transform_indices = @transform_4, window_bounds = array<i64: 1, 32, 96>}, {transform_indices = @transform_5, window_bounds = array<i64: 1, 1, 96>}, {transform_indices = @transform_6, window_bounds = array<i64: 1, 32, 32>}, {transform_indices = @transform_7, window_bounds = array<i64: 1, 1, 32>}, {transform_indices = @transform_8, window_bounds = array<i64: 1, 1, 32>}, {transform_indices = @transform_9, window_bounds = array<i64: 1, 1, 32>}, {transform_indices = @transform_10, window_bounds = array<i64: 1, 32, 64>}, {transform_indices = @transform_11, window_bounds = array<i64: 1, 1, 64>}, {transform_indices = @transform_12, window_bounds = array<i64: 1, 64, 32>}, {transform_indices = @transform_13, window_bounds = array<i64: 1, 1, 32>}, {transform_indices = @transform_14, window_bounds = array<i64: 1, 1, 32>}, {transform_indices = @transform_15, window_bounds = array<i64: 1, 1, 32>}, {transform_indices = @transform_16, window_bounds = array<i64: 8, 32>}]} {
    %c0_i32 = arith.constant 0 : i32
    %0 = arith.cmpi eq, %arg1, %c0_i32 : i32
    %1 = arith.extui %0 : i1 to i32
    %c0_i32_0 = arith.constant 0 : i32
    %2 = arith.cmpi ne, %1, %c0_i32_0 : i32
    scf.if %2 {
      %c0_78 = arith.constant 0 : index
      %c0_79 = arith.constant 0 : index
      %185 = vector.load %arg2[%c0_78, %c0_79] : memref<8x16xbf16, #tpu.memory_space<vmem>>, vector<8x16xbf16>
      %c0_80 = arith.constant 0 : index
      %c0_81 = arith.constant 0 : index
      %186 = vector.load %arg3[%c0_80, %c0_81] : memref<16x32xbf16, #tpu.memory_space<vmem>>, vector<16x32xbf16>
      %cst_82 = arith.constant dense<0.000000e+00> : vector<8x32xf32>
      %187 = tpu.matmul %185, %186, %cst_82 {dimension_numbers = #tpu.dot_dimension_numbers<[1], [0], [0], [1], [0, 0, 1, 1], [], []>} : vector<8x16xbf16>, vector<16x32xbf16>, vector<8x32xf32> -> vector<8x32xf32>
      %c0_83 = arith.constant 0 : index
      %c0_84 = arith.constant 0 : index
      %188 = vector.load %arg4[%c0_83, %c0_84] : memref<8x32xf32, #tpu.memory_space<vmem>>, vector<8x32xf32>
      %c0_85 = arith.constant 0 : index
      %c0_86 = arith.constant 0 : index
      %189 = vector.load %arg5[%c0_85, %c0_86] : memref<1x32xf32, #tpu.memory_space<vmem>>, vector<1x32xf32>
      %190 = vector.broadcast %189 : vector<1x32xf32> to vector<8x32xf32>
      %191 = arith.addf %188, %190 : vector<8x32xf32>
      %192 = vector.shape_cast %187 : vector<8x32xf32> to vector<1x8x32xf32>
      %193 = vector.shape_cast %191 : vector<8x32xf32> to vector<1x8x32xf32>
      %194 = arith.addf %192, %193 : vector<1x8x32xf32>
      %195 = vector.shape_cast %194 : vector<1x8x32xf32> to vector<8x32xf32>
      %c0_87 = arith.constant 0 : index
      %c0_88 = arith.constant 0 : index
      %196 = vector.load %arg19[%c0_87, %c0_88] : memref<8x32xf32, #tpu.memory_space<vmem>>, vector<8x32xf32>
      tpu.vector_store %arg19[%c0_87, %c0_88], %195 {strides = array<i32>} : memref<8x32xf32, #tpu.memory_space<vmem>>, vector<8x32xf32>,
    } else {
    }
    %c0 = arith.constant 0 : index
    %c0_1 = arith.constant 0 : index
    %3 = vector.load %arg19[%c0, %c0_1] : memref<8x32xf32, #tpu.memory_space<vmem>>, vector<8x32xf32>
    %4 = arith.truncf %3 : vector<8x32xf32> to vector<8x32xbf16>
    %c0_2 = arith.constant 0 : index
    %c0_3 = arith.constant 0 : index
    %c0_4 = arith.constant 0 : index
    %5 = vector.load %arg6[%c0_2, %c0_3, %c0_4] : memref<1x32x96xbf16, #tpu.memory_space<vmem>>, vector<1x32x96xbf16>
    %6 = vector.shape_cast %5 : vector<1x32x96xbf16> to vector<32x96xbf16>
    %cst = arith.constant dense<0.000000e+00> : vector<8x96xf32>
    %7 = tpu.matmul %4, %6, %cst {dimension_numbers = #tpu.dot_dimension_numbers<[1], [0], [0], [1], [0, 0, 1, 1], [], []>} : vector<8x32xbf16>, vector<32x96xbf16>, vector<8x96xf32> -> vector<8x96xf32>
    %c0_5 = arith.constant 0 : index
    %c0_6 = arith.constant 0 : index
    %c0_7 = arith.constant 0 : index
    %8 = vector.load %arg7[%c0_5, %c0_6, %c0_7] : memref<1x1x96xf32, #tpu.memory_space<vmem>>, vector<1x1x96xf32>
    %9 = vector.shape_cast %8 : vector<1x1x96xf32> to vector<1x96xf32>
    %10 = vector.broadcast %9 : vector<1x96xf32> to vector<8x96xf32>
    %11 = arith.addf %7, %10 : vector<8x96xf32>
    %12 = arith.truncf %11 : vector<8x96xf32> to vector<8x96xbf16>
    %13 = vector.extract_strided_slice %12 {offsets = [0, 0], sizes = [8, 8], strides = [1, 1]} : vector<8x96xbf16> to vector<8x8xbf16>
    %14 = vector.shape_cast %13 : vector<8x8xbf16> to vector<1x8x8xbf16>
    %15 = vector.extract_strided_slice %12 {offsets = [0, 32], sizes = [8, 8], strides = [1, 1]} : vector<8x96xbf16> to vector<8x8xbf16>
    %16 = vector.shape_cast %15 : vector<8x8xbf16> to vector<1x8x8xbf16>
    %17 = vector.extract_strided_slice %12 {offsets = [0, 64], sizes = [8, 8], strides = [1, 1]} : vector<8x96xbf16> to vector<8x8xbf16>
    %18 = vector.shape_cast %17 : vector<8x8xbf16> to vector<1x8x8xbf16>
    "tpu.trace_start"() <{level = 10 : i32, message = "bqd,bkd->bqk"}> : () -> ()
    %cst_8 = arith.constant dense<0.000000e+00> : vector<1x8x8xf32>
    %19 = tpu.matmul %14, %16, %cst_8 {dimension_numbers = #tpu.dot_dimension_numbers<[2], [2], [1], [1], [0, 0, 0, 1, 1, 1], [0], [0]>} : vector<1x8x8xbf16>, vector<1x8x8xbf16>, vector<1x8x8xf32> -> vector<1x8x8xf32>
    "tpu.trace_stop"() : () -> ()
    %cst_9 = arith.constant dense<0xFF800000> : vector<1x8xf32>
    %20 = vector.multi_reduction <maximumf>, %19, %cst_9 [2] : vector<1x8x8xf32> to vector<1x8xf32>
    %21 = vector.shape_cast %20 : vector<1x8xf32> to vector<1x8x1xf32>
    %22 = vector.broadcast %21 : vector<1x8x1xf32> to vector<1x8x8xf32>
    %23 = arith.subf %19, %22 : vector<1x8x8xf32>
    %24 = math.exp %23 : vector<1x8x8xf32>
    %cst_10 = arith.constant dense<0.000000e+00> : vector<1x8xf32>
    %25 = vector.multi_reduction <add>, %24, %cst_10 [2] : vector<1x8x8xf32> to vector<1x8xf32>
    %26 = vector.shape_cast %25 : vector<1x8xf32> to vector<1x8x1xf32>
    %27 = tpu.reciprocal %26 {approx = true} : vector<1x8x1xf32> -> vector<1x8x1xf32>
    %28 = vector.broadcast %27 : vector<1x8x1xf32> to vector<1x8x8xf32>
    %29 = arith.mulf %24, %28 : vector<1x8x8xf32>
    %30 = arith.truncf %29 : vector<1x8x8xf32> to vector<1x8x8xbf16>
    "tpu.trace_start"() <{level = 10 : i32, message = "bqk,bkd->bqd"}> : () -> ()
    %cst_11 = arith.constant dense<0.000000e+00> : vector<1x8x8xf32>
    %31 = tpu.matmul %30, %18, %cst_11 {dimension_numbers = #tpu.dot_dimension_numbers<[2], [1], [1], [2], [0, 0, 0, 1, 1, 2], [0], [0]>} : vector<1x8x8xbf16>, vector<1x8x8xbf16>, vector<1x8x8xf32> -> vector<1x8x8xf32>
    "tpu.trace_stop"() : () -> ()
    %32 = vector.shape_cast %31 : vector<1x8x8xf32> to vector<8x8xf32>
    %33 = arith.truncf %32 : vector<8x8xf32> to vector<8x8xbf16>
    %c0_12 = arith.constant 0 : index
    %c0_13 = arith.constant 0 : index
    %34 = vector.load %arg20[%c0_12, %c0_13] : memref<8x32xbf16, #tpu.memory_space<vmem>>, vector<8x8xbf16>
    tpu.vector_store %arg20[%c0_12, %c0_13], %33 {strides = array<i32>} : memref<8x32xbf16, #tpu.memory_space<vmem>>, vector<8x8xbf16>,
    %35 = vector.extract_strided_slice %12 {offsets = [0, 8], sizes = [8, 8], strides = [1, 1]} : vector<8x96xbf16> to vector<8x8xbf16>
    %36 = vector.shape_cast %35 : vector<8x8xbf16> to vector<1x8x8xbf16>
    %37 = vector.extract_strided_slice %12 {offsets = [0, 40], sizes = [8, 8], strides = [1, 1]} : vector<8x96xbf16> to vector<8x8xbf16>
    %38 = vector.shape_cast %37 : vector<8x8xbf16> to vector<1x8x8xbf16>
    %39 = vector.extract_strided_slice %12 {offsets = [0, 72], sizes = [8, 8], strides = [1, 1]} : vector<8x96xbf16> to vector<8x8xbf16>
    %40 = vector.shape_cast %39 : vector<8x8xbf16> to vector<1x8x8xbf16>
    "tpu.trace_start"() <{level = 10 : i32, message = "bqd,bkd->bqk"}> : () -> ()
    %cst_14 = arith.constant dense<0.000000e+00> : vector<1x8x8xf32>
    %41 = tpu.matmul %36, %38, %cst_14 {dimension_numbers = #tpu.dot_dimension_numbers<[2], [2], [1], [1], [0, 0, 0, 1, 1, 1], [0], [0]>} : vector<1x8x8xbf16>, vector<1x8x8xbf16>, vector<1x8x8xf32> -> vector<1x8x8xf32>
    "tpu.trace_stop"() : () -> ()
    %cst_15 = arith.constant dense<0xFF800000> : vector<1x8xf32>
    %42 = vector.multi_reduction <maximumf>, %41, %cst_15 [2] : vector<1x8x8xf32> to vector<1x8xf32>
    %43 = vector.shape_cast %42 : vector<1x8xf32> to vector<1x8x1xf32>
    %44 = vector.broadcast %43 : vector<1x8x1xf32> to vector<1x8x8xf32>
    %45 = arith.subf %41, %44 : vector<1x8x8xf32>
    %46 = math.exp %45 : vector<1x8x8xf32>
    %cst_16 = arith.constant dense<0.000000e+00> : vector<1x8xf32>
    %47 = vector.multi_reduction <add>, %46, %cst_16 [2] : vector<1x8x8xf32> to vector<1x8xf32>
    %48 = vector.shape_cast %47 : vector<1x8xf32> to vector<1x8x1xf32>
    %49 = tpu.reciprocal %48 {approx = true} : vector<1x8x1xf32> -> vector<1x8x1xf32>
    %50 = vector.broadcast %49 : vector<1x8x1xf32> to vector<1x8x8xf32>
    %51 = arith.mulf %46, %50 : vector<1x8x8xf32>
    %52 = arith.truncf %51 : vector<1x8x8xf32> to vector<1x8x8xbf16>
    "tpu.trace_start"() <{level = 10 : i32, message = "bqk,bkd->bqd"}> : () -> ()
    %cst_17 = arith.constant dense<0.000000e+00> : vector<1x8x8xf32>
    %53 = tpu.matmul %52, %40, %cst_17 {dimension_numbers = #tpu.dot_dimension_numbers<[2], [1], [1], [2], [0, 0, 0, 1, 1, 2], [0], [0]>} : vector<1x8x8xbf16>, vector<1x8x8xbf16>, vector<1x8x8xf32> -> vector<1x8x8xf32>
    "tpu.trace_stop"() : () -> ()
    %54 = vector.shape_cast %53 : vector<1x8x8xf32> to vector<8x8xf32>
    %55 = arith.truncf %54 : vector<8x8xf32> to vector<8x8xbf16>
    %c0_18 = arith.constant 0 : index
    %c8 = arith.constant 8 : index
    %56 = vector.load %arg20[%c0_18, %c8] : memref<8x32xbf16, #tpu.memory_space<vmem>>, vector<8x8xbf16>
    tpu.vector_store %arg20[%c0_18, %c8], %55 {strides = array<i32>} : memref<8x32xbf16, #tpu.memory_space<vmem>>, vector<8x8xbf16>,
    %57 = vector.extract_strided_slice %12 {offsets = [0, 16], sizes = [8, 8], strides = [1, 1]} : vector<8x96xbf16> to vector<8x8xbf16>
    %58 = vector.shape_cast %57 : vector<8x8xbf16> to vector<1x8x8xbf16>
    %59 = vector.extract_strided_slice %12 {offsets = [0, 48], sizes = [8, 8], strides = [1, 1]} : vector<8x96xbf16> to vector<8x8xbf16>
    %60 = vector.shape_cast %59 : vector<8x8xbf16> to vector<1x8x8xbf16>
    %61 = vector.extract_strided_slice %12 {offsets = [0, 80], sizes = [8, 8], strides = [1, 1]} : vector<8x96xbf16> to vector<8x8xbf16>
    %62 = vector.shape_cast %61 : vector<8x8xbf16> to vector<1x8x8xbf16>
    "tpu.trace_start"() <{level = 10 : i32, message = "bqd,bkd->bqk"}> : () -> ()
    %cst_19 = arith.constant dense<0.000000e+00> : vector<1x8x8xf32>
    %63 = tpu.matmul %58, %60, %cst_19 {dimension_numbers = #tpu.dot_dimension_numbers<[2], [2], [1], [1], [0, 0, 0, 1, 1, 1], [0], [0]>} : vector<1x8x8xbf16>, vector<1x8x8xbf16>, vector<1x8x8xf32> -> vector<1x8x8xf32>
    "tpu.trace_stop"() : () -> ()
    %cst_20 = arith.constant dense<0xFF800000> : vector<1x8xf32>
    %64 = vector.multi_reduction <maximumf>, %63, %cst_20 [2] : vector<1x8x8xf32> to vector<1x8xf32>
    %65 = vector.shape_cast %64 : vector<1x8xf32> to vector<1x8x1xf32>
    %66 = vector.broadcast %65 : vector<1x8x1xf32> to vector<1x8x8xf32>
    %67 = arith.subf %63, %66 : vector<1x8x8xf32>
    %68 = math.exp %67 : vector<1x8x8xf32>
    %cst_21 = arith.constant dense<0.000000e+00> : vector<1x8xf32>
    %69 = vector.multi_reduction <add>, %68, %cst_21 [2] : vector<1x8x8xf32> to vector<1x8xf32>
    %70 = vector.shape_cast %69 : vector<1x8xf32> to vector<1x8x1xf32>
    %71 = tpu.reciprocal %70 {approx = true} : vector<1x8x1xf32> -> vector<1x8x1xf32>
    %72 = vector.broadcast %71 : vector<1x8x1xf32> to vector<1x8x8xf32>
    %73 = arith.mulf %68, %72 : vector<1x8x8xf32>
    %74 = arith.truncf %73 : vector<1x8x8xf32> to vector<1x8x8xbf16>
    "tpu.trace_start"() <{level = 10 : i32, message = "bqk,bkd->bqd"}> : () -> ()
    %cst_22 = arith.constant dense<0.000000e+00> : vector<1x8x8xf32>
    %75 = tpu.matmul %74, %62, %cst_22 {dimension_numbers = #tpu.dot_dimension_numbers<[2], [1], [1], [2], [0, 0, 0, 1, 1, 2], [0], [0]>} : vector<1x8x8xbf16>, vector<1x8x8xbf16>, vector<1x8x8xf32> -> vector<1x8x8xf32>
    "tpu.trace_stop"() : () -> ()
    %76 = vector.shape_cast %75 : vector<1x8x8xf32> to vector<8x8xf32>
    %77 = arith.truncf %76 : vector<8x8xf32> to vector<8x8xbf16>
    %c0_23 = arith.constant 0 : index
    %c16 = arith.constant 16 : index
    %78 = vector.load %arg20[%c0_23, %c16] : memref<8x32xbf16, #tpu.memory_space<vmem>>, vector<8x8xbf16>
    tpu.vector_store %arg20[%c0_23, %c16], %77 {strides = array<i32>} : memref<8x32xbf16, #tpu.memory_space<vmem>>, vector<8x8xbf16>,
    %79 = vector.extract_strided_slice %12 {offsets = [0, 24], sizes = [8, 8], strides = [1, 1]} : vector<8x96xbf16> to vector<8x8xbf16>
    %80 = vector.shape_cast %79 : vector<8x8xbf16> to vector<1x8x8xbf16>
    %81 = vector.extract_strided_slice %12 {offsets = [0, 56], sizes = [8, 8], strides = [1, 1]} : vector<8x96xbf16> to vector<8x8xbf16>
    %82 = vector.shape_cast %81 : vector<8x8xbf16> to vector<1x8x8xbf16>
    %83 = vector.extract_strided_slice %12 {offsets = [0, 88], sizes = [8, 8], strides = [1, 1]} : vector<8x96xbf16> to vector<8x8xbf16>
    %84 = vector.shape_cast %83 : vector<8x8xbf16> to vector<1x8x8xbf16>
    "tpu.trace_start"() <{level = 10 : i32, message = "bqd,bkd->bqk"}> : () -> ()
    %cst_24 = arith.constant dense<0.000000e+00> : vector<1x8x8xf32>
    %85 = tpu.matmul %80, %82, %cst_24 {dimension_numbers = #tpu.dot_dimension_numbers<[2], [2], [1], [1], [0, 0, 0, 1, 1, 1], [0], [0]>} : vector<1x8x8xbf16>, vector<1x8x8xbf16>, vector<1x8x8xf32> -> vector<1x8x8xf32>
    "tpu.trace_stop"() : () -> ()
    %cst_25 = arith.constant dense<0xFF800000> : vector<1x8xf32>
    %86 = vector.multi_reduction <maximumf>, %85, %cst_25 [2] : vector<1x8x8xf32> to vector<1x8xf32>
    %87 = vector.shape_cast %86 : vector<1x8xf32> to vector<1x8x1xf32>
    %88 = vector.broadcast %87 : vector<1x8x1xf32> to vector<1x8x8xf32>
    %89 = arith.subf %85, %88 : vector<1x8x8xf32>
    %90 = math.exp %89 : vector<1x8x8xf32>
    %cst_26 = arith.constant dense<0.000000e+00> : vector<1x8xf32>
    %91 = vector.multi_reduction <add>, %90, %cst_26 [2] : vector<1x8x8xf32> to vector<1x8xf32>
    %92 = vector.shape_cast %91 : vector<1x8xf32> to vector<1x8x1xf32>
    %93 = tpu.reciprocal %92 {approx = true} : vector<1x8x1xf32> -> vector<1x8x1xf32>
    %94 = vector.broadcast %93 : vector<1x8x1xf32> to vector<1x8x8xf32>
    %95 = arith.mulf %90, %94 : vector<1x8x8xf32>
    %96 = arith.truncf %95 : vector<1x8x8xf32> to vector<1x8x8xbf16>
    "tpu.trace_start"() <{level = 10 : i32, message = "bqk,bkd->bqd"}> : () -> ()
    %cst_27 = arith.constant dense<0.000000e+00> : vector<1x8x8xf32>
    %97 = tpu.matmul %96, %84, %cst_27 {dimension_numbers = #tpu.dot_dimension_numbers<[2], [1], [1], [2], [0, 0, 0, 1, 1, 2], [0], [0]>} : vector<1x8x8xbf16>, vector<1x8x8xbf16>, vector<1x8x8xf32> -> vector<1x8x8xf32>
    "tpu.trace_stop"() : () -> ()
    %98 = vector.shape_cast %97 : vector<1x8x8xf32> to vector<8x8xf32>
    %99 = arith.truncf %98 : vector<8x8xf32> to vector<8x8xbf16>
    %c0_28 = arith.constant 0 : index
    %c24 = arith.constant 24 : index
    %100 = vector.load %arg20[%c0_28, %c24] : memref<8x32xbf16, #tpu.memory_space<vmem>>, vector<8x8xbf16>
    tpu.vector_store %arg20[%c0_28, %c24], %99 {strides = array<i32>} : memref<8x32xbf16, #tpu.memory_space<vmem>>, vector<8x8xbf16>,
    %c0_29 = arith.constant 0 : index
    %c0_30 = arith.constant 0 : index
    %101 = vector.load %arg20[%c0_29, %c0_30] : memref<8x32xbf16, #tpu.memory_space<vmem>>, vector<8x32xbf16>
    %c0_31 = arith.constant 0 : index
    %c0_32 = arith.constant 0 : index
    %c0_33 = arith.constant 0 : index
    %102 = vector.load %arg8[%c0_31, %c0_32, %c0_33] : memref<1x32x32xbf16, #tpu.memory_space<vmem>>, vector<1x32x32xbf16>
    %103 = vector.shape_cast %102 : vector<1x32x32xbf16> to vector<32x32xbf16>
    %cst_34 = arith.constant dense<0.000000e+00> : vector<8x32xf32>
    %104 = tpu.matmul %101, %103, %cst_34 {dimension_numbers = #tpu.dot_dimension_numbers<[1], [0], [0], [1], [0, 0, 1, 1], [], []>} : vector<8x32xbf16>, vector<32x32xbf16>, vector<8x32xf32> -> vector<8x32xf32>
    %c0_35 = arith.constant 0 : index
    %c0_36 = arith.constant 0 : index
    %c0_37 = arith.constant 0 : index
    %105 = vector.load %arg9[%c0_35, %c0_36, %c0_37] : memref<1x1x32xf32, #tpu.memory_space<vmem>>, vector<1x1x32xf32>
    %106 = vector.shape_cast %105 : vector<1x1x32xf32> to vector<1x32xf32>
    %107 = vector.broadcast %106 : vector<1x32xf32> to vector<8x32xf32>
    %108 = arith.addf %104, %107 : vector<8x32xf32>
    %109 = arith.addf %3, %108 : vector<8x32xf32>
    %cst_38 = arith.constant dense<0.000000e+00> : vector<8xf32>
    %110 = vector.multi_reduction <add>, %109, %cst_38 [1] : vector<8x32xf32> to vector<8xf32>
    %111 = vector.shape_cast %110 : vector<8xf32> to vector<8x1xf32>
    %cst_39 = arith.constant 3.200000e+01 : f32
    %112 = vector.broadcast %cst_39 : f32 to vector<8x1xf32>
    %113 = arith.divf %111, %112 : vector<8x1xf32>
    %114 = vector.broadcast %113 : vector<8x1xf32> to vector<8x32xf32>
    %115 = arith.subf %109, %114 : vector<8x32xf32>
    %116 = arith.mulf %115, %115 : vector<8x32xf32>
    %cst_40 = arith.constant dense<0.000000e+00> : vector<8xf32>
    %117 = vector.multi_reduction <add>, %116, %cst_40 [1] : vector<8x32xf32> to vector<8xf32>
    %118 = vector.shape_cast %117 : vector<8xf32> to vector<8x1xf32>
    %cst_41 = arith.constant 3.200000e+01 : f32
    %119 = vector.broadcast %cst_41 : f32 to vector<8x1xf32>
    %120 = arith.divf %118, %119 : vector<8x1xf32>
    %121 = vector.broadcast %113 : vector<8x1xf32> to vector<8x32xf32>
    %122 = arith.subf %109, %121 : vector<8x32xf32>
    %cst_42 = arith.constant 9.99999974E-6 : f32
    %123 = vector.broadcast %cst_42 : f32 to vector<8x1xf32>
    %124 = arith.addf %120, %123 : vector<8x1xf32>
    %125 = math.rsqrt %124 : vector<8x1xf32>
    %126 = vector.broadcast %125 : vector<8x1xf32> to vector<8x32xf32>
    %127 = arith.mulf %122, %126 : vector<8x32xf32>
    %c0_43 = arith.constant 0 : index
    %c0_44 = arith.constant 0 : index
    %c0_45 = arith.constant 0 : index
    %128 = vector.load %arg10[%c0_43, %c0_44, %c0_45] : memref<1x1x32xf32, #tpu.memory_space<vmem>>, vector<1x1x32xf32>
    %129 = vector.shape_cast %128 : vector<1x1x32xf32> to vector<1x32xf32>
    %130 = vector.broadcast %129 : vector<1x32xf32> to vector<8x32xf32>
    %131 = arith.mulf %127, %130 : vector<8x32xf32>
    %c0_46 = arith.constant 0 : index
    %c0_47 = arith.constant 0 : index
    %c0_48 = arith.constant 0 : index
    %132 = vector.load %arg11[%c0_46, %c0_47, %c0_48] : memref<1x1x32xf32, #tpu.memory_space<vmem>>, vector<1x1x32xf32>
    %133 = vector.shape_cast %132 : vector<1x1x32xf32> to vector<1x32xf32>
    %134 = vector.broadcast %133 : vector<1x32xf32> to vector<8x32xf32>
    %135 = arith.addf %131, %134 : vector<8x32xf32>
    %136 = arith.truncf %135 : vector<8x32xf32> to vector<8x32xbf16>
    %c0_49 = arith.constant 0 : index
    %c0_50 = arith.constant 0 : index
    %c0_51 = arith.constant 0 : index
    %137 = vector.load %arg12[%c0_49, %c0_50, %c0_51] : memref<1x32x64xbf16, #tpu.memory_space<vmem>>, vector<1x32x64xbf16>
    %138 = vector.shape_cast %137 : vector<1x32x64xbf16> to vector<32x64xbf16>
    %cst_52 = arith.constant dense<0.000000e+00> : vector<8x64xf32>
    %139 = tpu.matmul %136, %138, %cst_52 {dimension_numbers = #tpu.dot_dimension_numbers<[1], [0], [0], [1], [0, 0, 1, 1], [], []>} : vector<8x32xbf16>, vector<32x64xbf16>, vector<8x64xf32> -> vector<8x64xf32>
    %c0_53 = arith.constant 0 : index
    %c0_54 = arith.constant 0 : index
    %c0_55 = arith.constant 0 : index
    %140 = vector.load %arg13[%c0_53, %c0_54, %c0_55] : memref<1x1x64xf32, #tpu.memory_space<vmem>>, vector<1x1x64xf32>
    %141 = vector.shape_cast %140 : vector<1x1x64xf32> to vector<1x64xf32>
    %142 = vector.broadcast %141 : vector<1x64xf32> to vector<8x64xf32>
    %143 = arith.addf %139, %142 : vector<8x64xf32>
    %cst_56 = arith.constant 0.000000e+00 : f32
    %144 = vector.broadcast %cst_56 : f32 to vector<8x64xf32>
    %145 = arith.maximumf %143, %144 : vector<8x64xf32>
    %146 = arith.truncf %145 : vector<8x64xf32> to vector<8x64xbf16>
    %c0_57 = arith.constant 0 : index
    %c0_58 = arith.constant 0 : index
    %c0_59 = arith.constant 0 : index
    %147 = vector.load %arg14[%c0_57, %c0_58, %c0_59] : memref<1x64x32xbf16, #tpu.memory_space<vmem>>, vector<1x64x32xbf16>
    %148 = vector.shape_cast %147 : vector<1x64x32xbf16> to vector<64x32xbf16>
    %cst_60 = arith.constant dense<0.000000e+00> : vector<8x32xf32>
    %149 = tpu.matmul %146, %148, %cst_60 {dimension_numbers = #tpu.dot_dimension_numbers<[1], [0], [0], [1], [0, 0, 1, 1], [], []>} : vector<8x64xbf16>, vector<64x32xbf16>, vector<8x32xf32> -> vector<8x32xf32>
    %c0_61 = arith.constant 0 : index
    %c0_62 = arith.constant 0 : index
    %c0_63 = arith.constant 0 : index
    %150 = vector.load %arg15[%c0_61, %c0_62, %c0_63] : memref<1x1x32xf32, #tpu.memory_space<vmem>>, vector<1x1x32xf32>
    %151 = vector.shape_cast %150 : vector<1x1x32xf32> to vector<1x32xf32>
    %152 = vector.broadcast %151 : vector<1x32xf32> to vector<8x32xf32>
    %153 = arith.addf %149, %152 : vector<8x32xf32>
    %154 = arith.addf %135, %153 : vector<8x32xf32>
    %cst_64 = arith.constant dense<0.000000e+00> : vector<8xf32>
    %155 = vector.multi_reduction <add>, %154, %cst_64 [1] : vector<8x32xf32> to vector<8xf32>
    %156 = vector.shape_cast %155 : vector<8xf32> to vector<8x1xf32>
    %cst_65 = arith.constant 3.200000e+01 : f32
    %157 = vector.broadcast %cst_65 : f32 to vector<8x1xf32>
    %158 = arith.divf %156, %157 : vector<8x1xf32>
    %159 = vector.broadcast %158 : vector<8x1xf32> to vector<8x32xf32>
    %160 = arith.subf %154, %159 : vector<8x32xf32>
    %161 = arith.mulf %160, %160 : vector<8x32xf32>
    %cst_66 = arith.constant dense<0.000000e+00> : vector<8xf32>
    %162 = vector.multi_reduction <add>, %161, %cst_66 [1] : vector<8x32xf32> to vector<8xf32>
    %163 = vector.shape_cast %162 : vector<8xf32> to vector<8x1xf32>
    %cst_67 = arith.constant 3.200000e+01 : f32
    %164 = vector.broadcast %cst_67 : f32 to vector<8x1xf32>
    %165 = arith.divf %163, %164 : vector<8x1xf32>
    %166 = vector.broadcast %158 : vector<8x1xf32> to vector<8x32xf32>
    %167 = arith.subf %154, %166 : vector<8x32xf32>
    %cst_68 = arith.constant 9.99999974E-6 : f32
    %168 = vector.broadcast %cst_68 : f32 to vector<8x1xf32>
    %169 = arith.addf %165, %168 : vector<8x1xf32>
    %170 = math.rsqrt %169 : vector<8x1xf32>
    %171 = vector.broadcast %170 : vector<8x1xf32> to vector<8x32xf32>
    %172 = arith.mulf %167, %171 : vector<8x32xf32>
    %c0_69 = arith.constant 0 : index
    %c0_70 = arith.constant 0 : index
    %c0_71 = arith.constant 0 : index
    %173 = vector.load %arg16[%c0_69, %c0_70, %c0_71] : memref<1x1x32xf32, #tpu.memory_space<vmem>>, vector<1x1x32xf32>
    %174 = vector.shape_cast %173 : vector<1x1x32xf32> to vector<1x32xf32>
    %175 = vector.broadcast %174 : vector<1x32xf32> to vector<8x32xf32>
    %176 = arith.mulf %172, %175 : vector<8x32xf32>
    %c0_72 = arith.constant 0 : index
    %c0_73 = arith.constant 0 : index
    %c0_74 = arith.constant 0 : index
    %177 = vector.load %arg17[%c0_72, %c0_73, %c0_74] : memref<1x1x32xf32, #tpu.memory_space<vmem>>, vector<1x1x32xf32>
    %178 = vector.shape_cast %177 : vector<1x1x32xf32> to vector<1x32xf32>
    %179 = vector.broadcast %178 : vector<1x32xf32> to vector<8x32xf32>
    %180 = arith.addf %176, %179 : vector<8x32xf32>
    %c0_75 = arith.constant 0 : index
    %c0_76 = arith.constant 0 : index
    %181 = vector.load %arg19[%c0_75, %c0_76] : memref<8x32xf32, #tpu.memory_space<vmem>>, vector<8x32xf32>
    tpu.vector_store %arg19[%c0_75, %c0_76], %180 {strides = array<i32>} : memref<8x32xf32, #tpu.memory_space<vmem>>, vector<8x32xf32>,
    %c1_i32 = arith.constant 1 : i32
    %182 = arith.cmpi eq, %arg1, %c1_i32 : i32
    %183 = arith.extui %182 : i1 to i32
    %c0_i32_77 = arith.constant 0 : i32
    %184 = arith.cmpi ne, %183, %c0_i32_77 : i32
    scf.if %184 {
      %c0_78 = arith.constant 0 : index
      %c0_79 = arith.constant 0 : index
      %185 = vector.load %arg18[%c0_78, %c0_79] : memref<8x32xf32, #tpu.memory_space<vmem>>, vector<8x32xf32>
      tpu.vector_store %arg18[%c0_78, %c0_79], %180 {strides = array<i32>} : memref<8x32xf32, #tpu.memory_space<vmem>>, vector<8x32xf32>,
    } else {
    }
    return
  }
  func.func @transform_0(%arg0: i32, %arg1: i32) -> (i32, i32) {
    %c0_i32 = arith.constant 0 : i32
    %c0_i32_0 = arith.constant 0 : i32
    return %arg0, %c0_i32 : i32, i32
  }
  func.func @transform_1(%arg0: i32, %arg1: i32) -> (i32, i32) {
    %c0_i32 = arith.constant 0 : i32
    %c0_i32_0 = arith.constant 0 : i32
    %c0_i32_1 = arith.constant 0 : i32
    return %c0_i32, %c0_i32_0 : i32, i32
  }
  func.func @transform_2(%arg0: i32, %arg1: i32) -> (i32, i32) {
    %c0_i32 = arith.constant 0 : i32
    %c0_i32_0 = arith.constant 0 : i32
    %c0_i32_1 = arith.constant 0 : i32
    return %c0_i32, %c0_i32_0 : i32, i32
  }
  func.func @transform_3(%arg0: i32, %arg1: i32) -> (i32, i32) {
    %c0_i32 = arith.constant 0 : i32
    %c0_i32_0 = arith.constant 0 : i32
    %c0_i32_1 = arith.constant 0 : i32
    return %c0_i32, %c0_i32_0 : i32, i32
  }
  func.func @transform_4(%arg0: i32, %arg1: i32) -> (i32, i32, i32) {
    %c0_i32 = arith.constant 0 : i32
    %c0_i32_0 = arith.constant 0 : i32
    %c0_i32_1 = arith.constant 0 : i32
    return %arg1, %c0_i32, %c0_i32_0 : i32, i32, i32
  }
  func.func @transform_5(%arg0: i32, %arg1: i32) -> (i32, i32, i32) {
    %c0_i32 = arith.constant 0 : i32
    %c0_i32_0 = arith.constant 0 : i32
    %c0_i32_1 = arith.constant 0 : i32
    return %arg1, %c0_i32, %c0_i32_0 : i32, i32, i32
  }
  func.func @transform_6(%arg0: i32, %arg1: i32) -> (i32, i32, i32) {
    %c0_i32 = arith.constant 0 : i32
    %c0_i32_0 = arith.constant 0 : i32
    %c0_i32_1 = arith.constant 0 : i32
    return %arg1, %c0_i32, %c0_i32_0 : i32, i32, i32
  }
  func.func @transform_7(%arg0: i32, %arg1: i32) -> (i32, i32, i32) {
    %c0_i32 = arith.constant 0 : i32
    %c0_i32_0 = arith.constant 0 : i32
    %c0_i32_1 = arith.constant 0 : i32
    return %arg1, %c0_i32, %c0_i32_0 : i32, i32, i32
  }
  func.func @transform_8(%arg0: i32, %arg1: i32) -> (i32, i32, i32) {
    %c0_i32 = arith.constant 0 : i32
    %c0_i32_0 = arith.constant 0 : i32
    %c0_i32_1 = arith.constant 0 : i32
    return %arg1, %c0_i32, %c0_i32_0 : i32, i32, i32
  }
  func.func @transform_9(%arg0: i32, %arg1: i32) -> (i32, i32, i32) {
    %c0_i32 = arith.constant 0 : i32
    %c0_i32_0 = arith.constant 0 : i32
    %c0_i32_1 = arith.constant 0 : i32
    return %arg1, %c0_i32, %c0_i32_0 : i32, i32, i32
  }
  func.func @transform_10(%arg0: i32, %arg1: i32) -> (i32, i32, i32) {
    %c0_i32 = arith.constant 0 : i32
    %c0_i32_0 = arith.constant 0 : i32
    %c0_i32_1 = arith.constant 0 : i32
    return %arg1, %c0_i32, %c0_i32_0 : i32, i32, i32
  }
  func.func @transform_11(%arg0: i32, %arg1: i32) -> (i32, i32, i32) {
    %c0_i32 = arith.constant 0 : i32
    %c0_i32_0 = arith.constant 0 : i32
    %c0_i32_1 = arith.constant 0 : i32
    return %arg1, %c0_i32, %c0_i32_0 : i32, i32, i32
  }
  func.func @transform_12(%arg0: i32, %arg1: i32) -> (i32, i32, i32) {
    %c0_i32 = arith.constant 0 : i32
    %c0_i32_0 = arith.constant 0 : i32
    %c0_i32_1 = arith.constant 0 : i32
    return %arg1, %c0_i32, %c0_i32_0 : i32, i32, i32
  }
  func.func @transform_13(%arg0: i32, %arg1: i32) -> (i32, i32, i32) {
    %c0_i32 = arith.constant 0 : i32
    %c0_i32_0 = arith.constant 0 : i32
    %c0_i32_1 = arith.constant 0 : i32
    return %arg1, %c0_i32, %c0_i32_0 : i32, i32, i32
  }
  func.func @transform_14(%arg0: i32, %arg1: i32) -> (i32, i32, i32) {
    %c0_i32 = arith.constant 0 : i32
    %c0_i32_0 = arith.constant 0 : i32
    %c0_i32_1 = arith.constant 0 : i32
    return %arg1, %c0_i32, %c0_i32_0 : i32, i32, i32
  }
  func.func @transform_15(%arg0: i32, %arg1: i32) -> (i32, i32, i32) {
    %c0_i32 = arith.constant 0 : i32
    %c0_i32_0 = arith.constant 0 : i32
    %c0_i32_1 = arith.constant 0 : i32
    return %arg1, %c0_i32, %c0_i32_0 : i32, i32, i32
  }
  func.func @transform_16(%arg0: i32, %arg1: i32) -> (i32, i32) {
    %c0_i32 = arith.constant 0 : i32
    %c0_i32_0 = arith.constant 0 : i32
    return %arg0, %c0_i32 : i32, i32
  }
}

</mosaic_0001>

<llo_original>
// kernel: backbone_forward.1
$region0: #{backbone_forward.1}
  #allocation0 [shape = 'u32[]', space=smem, size = 0x4, offset = 0x4, fixed_abs, tag = 'smem constant byte address 0x4 - core index']
  #allocation1 [shape = 'u32[144,128]{1,0:T(1,128)}', space=vmem, size = 0x12000, scoped, tag = 'internal scratch']
  #allocation2 [shape = 'f32[8,32]{1,0:T(8,128)}', space=vmem, size = 0x1000, scoped, tag = 'scratch operand']
  #allocation3 [shape = 'bf16[8,32]{1,0:T(8,128)(2,1)}', space=vmem, size = 0x800, scoped, tag = 'scratch operand']
  %s0 = inlined_call_operand.vmem [shape: bf16[16,16], index: 0, kind: input, shape index: {}]
  %s1 = inlined_call_operand.vmem [shape: bf16[16,32], index: 1, kind: input, shape index: {}]
  %s2 = inlined_call_operand.vmem [shape: f32[8,32], index: 2, kind: input, shape index: {}]
  %s3 = inlined_call_operand.vmem [shape: f32[1,32], index: 3, kind: input, shape index: {}]
  %s4 = inlined_call_operand.vmem [shape: bf16[2,32,96], index: 4, kind: input, shape index: {}]
  %s5 = inlined_call_operand.vmem [shape: f32[2,1,96], index: 5, kind: input, shape index: {}]
  %s6 = inlined_call_operand.vmem [shape: bf16[2,32,32], index: 6, kind: input, shape index: {}]
  %s7 = inlined_call_operand.vmem [shape: f32[2,1,32], index: 7, kind: input, shape index: {}]
  %s8 = inlined_call_operand.vmem [shape: f32[2,1,32], index: 8, kind: input, shape index: {}]
  %s9 = inlined_call_operand.vmem [shape: f32[2,1,32], index: 9, kind: input, shape index: {}]
  %s10 = inlined_call_operand.vmem [shape: bf16[2,32,64], index: 10, kind: input, shape index: {}]
  %s11 = inlined_call_operand.vmem [shape: f32[2,1,64], index: 11, kind: input, shape index: {}]
  %s12 = inlined_call_operand.vmem [shape: bf16[2,64,32], index: 12, kind: input, shape index: {}]
  %s13 = inlined_call_operand.vmem [shape: f32[2,1,32], index: 13, kind: input, shape index: {}]
  %s14 = inlined_call_operand.vmem [shape: f32[2,1,32], index: 14, kind: input, shape index: {}]
  %s15 = inlined_call_operand.vmem [shape: f32[2,1,32], index: 15, kind: input, shape index: {}]
  %s16 = inlined_call_operand.hbm [shape: f32[16,32], index: 16, kind: output, shape index: {}]
  %s17 = sld [smem:[#allocation0]]
  $region105: #{backbone_forward.1} parent=0
    _
  %s19 = ssub.s32 1, %s17
  %s20 = scalar_select 0, %s19, %s17
  $region1: #{backbone_forward.1} parent=0
    #allocation4 [shape = 'u8[8192]{0}', space=vmem, size = 0x2000, scoped, tag = 'output window, operand 0']
    #allocation5 [shape = 's32[2]{0}', space=sflag, size = 0x8, scoped, tag = 'scoped memory for backbone_forward.1']
    %21 = vsyncpa [#allocation5], 0
    %s22 = scalar_lea.sflag [#allocation5], 1
    %23 = vsyncpa %s22, 0
    loop: start=0, step=1, limit=6
    $region2: #{backbone_forward.1} parent=1 // loop_pre_header
      _
    $region3: #{backbone_forward.1} parent=1 // loop_header
      %s25 = sphi 0, %s29
      %p26 = scmp.ge.s32.totalorder %s25, 6
      %s32 = sphi 0, %s44
      %s33 = sphi 0, %s40
      %s34 = sphi 0, %s32
      %s35 = sphi 0, %s33
      %s36 = sphi 0, %s34
      %s37 = sphi 0, %s35
      %s47 = sphi 0, %s49
      %s50 = sphi 0, %s47
      %s51 = sphi 0, %s50
      %s67 = sphi 0, %s51
      %s71 = sphi 0, %s71
      %s73 = sphi 0, %s71
      %s74 = sphi 0, %s73
      %s88 = sphi 0, %s74
      %s92 = sphi 0, %s92
      %s94 = sphi 0, %s92
      %s95 = sphi 0, %s94
      %s109 = sphi 0, %s95
      %s113 = sphi 0, %s113
      %s115 = sphi 0, %s113
      %s116 = sphi 0, %s115
      %s130 = sphi 0, %s116
      %s136 = sphi 0, %s138
      %s139 = sphi 0, %s136
      %s140 = sphi 0, %s139
      %s156 = sphi 0, %s140
      %s162 = sphi 0, %s164
      %s165 = sphi 0, %s162
      %s166 = sphi 0, %s165
      %s182 = sphi 0, %s166
      %s188 = sphi 0, %s190
      %s191 = sphi 0, %s188
      %s192 = sphi 0, %s191
      %s208 = sphi 0, %s192
      %s214 = sphi 0, %s216
      %s217 = sphi 0, %s214
      %s218 = sphi 0, %s217
      %s234 = sphi 0, %s218
      %s240 = sphi 0, %s242
      %s243 = sphi 0, %s240
      %s244 = sphi 0, %s243
      %s260 = sphi 0, %s244
      %s266 = sphi 0, %s268
      %s269 = sphi 0, %s266
      %s270 = sphi 0, %s269
      %s286 = sphi 0, %s270
      %s292 = sphi 0, %s294
      %s295 = sphi 0, %s292
      %s296 = sphi 0, %s295
      %s312 = sphi 0, %s296
      %s318 = sphi 0, %s320
      %s321 = sphi 0, %s318
      %s322 = sphi 0, %s321
      %s338 = sphi 0, %s322
      %s344 = sphi 0, %s346
      %s347 = sphi 0, %s344
      %s348 = sphi 0, %s347
      %s364 = sphi 0, %s348
      %s370 = sphi 0, %s372
      %s373 = sphi 0, %s370
      %s374 = sphi 0, %s373
      %s390 = sphi 0, %s374
      %s396 = sphi 0, %s398
      %s399 = sphi 0, %s396
      %s400 = sphi 0, %s399
      %s416 = sphi 0, %s400
      %s422 = sphi 0, %s424
      %s425 = sphi 0, %s422
      %s426 = sphi 0, %s425
      %s442 = sphi 0, %s426
      %s448 = sphi 0, %s450
      %s451 = sphi 0, %s448
      %s452 = sphi 0, %s451
      %s468 = sphi 0, %s452
    $region4: #{backbone_forward.1} parent=1 // loop_header_branch
      %28 = sbr.rel (%p26) target = $region8
    $region5: #{backbone_forward.1} parent=1 // loop_body
      %s30 = ssub.s32 %s25, 1
      %s31 = ssub.s32 %s25, 2
      %s38 = sadd.s32 1, %s33
      %p39 = scmp.ge.s32.totalorder %s38, 2
      %s40 = scalar_select %p39, 0, %s38
      %s41 = sadd.s32 1, %s32
      %s42 = scalar_select %p39, %s41, %s32
      %p43 = scmp.ge.s32.totalorder %s42, 2
      %s44 = scalar_select %p43, 0, %s42
      %s45 = ssub.s32 %s32, %s44
      %p46 = scmp.eq.s32.totalorder %s45, 0
      %s48 = sadd.s32 %s47, 1
      %s49 = scalar_select %p46, %s47, %s48
      %p52 = pneg %p46
      %p53 = scmp.eq.s32.totalorder %s25, 3
      %p54 = por %p52, %p53
      %p55 = scmp.ne.s32.totalorder %s47, %s50
      %p56 = scmp.eq.s32.totalorder %s25, 0
      %p57 = por %p55, %p56
      %p58 = scmp.ne.s32.totalorder %s47, %s50
      %p59 = scmp.eq.s32.totalorder %s30, 3
      %p60 = por %p58, %p59
      %p61 = scmp.ne.s32.totalorder %s50, %s51
      %p62 = scmp.eq.s32.totalorder %s30, 0
      %p63 = por %p61, %p62
      %p64 = scmp.ne.s32.totalorder %s50, %s51
      %p65 = scmp.eq.s32.totalorder %s31, 3
      %p66 = por %p64, %p65
      %p68 = scmp.ne.s32.totalorder %s51, %s67
      %p69 = scmp.eq.s32.totalorder %s31, 0
      %p70 = por %p68, %p69
      %s72 = sadd.s32 %s71, 1
      %p75 = scmp.eq.s32.totalorder %s25, 3
      %p76 = scmp.ne.s32.totalorder %s71, %s73
      %p77 = scmp.eq.s32.totalorder %s25, 0
      %p78 = por %p76, %p77
      %p79 = scmp.ne.s32.totalorder %s71, %s73
      %p80 = scmp.eq.s32.totalorder %s30, 3
      %p81 = por %p79, %p80
      %p82 = scmp.ne.s32.totalorder %s73, %s74
      %p83 = scmp.eq.s32.totalorder %s30, 0
      %p84 = por %p82, %p83
      %p85 = scmp.ne.s32.totalorder %s73, %s74
      %p86 = scmp.eq.s32.totalorder %s31, 3
      %p87 = por %p85, %p86
      %p89 = scmp.ne.s32.totalorder %s74, %s88
      %p90 = scmp.eq.s32.totalorder %s31, 0
      %p91 = por %p89, %p90
      %s93 = sadd.s32 %s92, 1
      %p96 = scmp.eq.s32.totalorder %s25, 3
      %p97 = scmp.ne.s32.totalorder %s92, %s94
      %p98 = scmp.eq.s32.totalorder %s25, 0
      %p99 = por %p97, %p98
      %p100 = scmp.ne.s32.totalorder %s92, %s94
      %p101 = scmp.eq.s32.totalorder %s30, 3
      %p102 = por %p100, %p101
      %p103 = scmp.ne.s32.totalorder %s94, %s95
      %p104 = scmp.eq.s32.totalorder %s30, 0
      %p105 = por %p103, %p104
      %p106 = scmp.ne.s32.totalorder %s94, %s95
      %p107 = scmp.eq.s32.totalorder %s31, 3
      %p108 = por %p106, %p107
      %p110 = scmp.ne.s32.totalorder %s95, %s109
      %p111 = scmp.eq.s32.totalorder %s31, 0
      %p112 = por %p110, %p111
      %s114 = sadd.s32 %s113, 1
      %p117 = scmp.eq.s32.totalorder %s25, 3
      %p118 = scmp.ne.s32.totalorder %s113, %s115
      %p119 = scmp.eq.s32.totalorder %s25, 0
      %p120 = por %p118, %p119
      %p121 = scmp.ne.s32.totalorder %s113, %s115
      %p122 = scmp.eq.s32.totalorder %s30, 3
      %p123 = por %p121, %p122
      %p124 = scmp.ne.s32.totalorder %s115, %s116
      %p125 = scmp.eq.s32.totalorder %s30, 0
      %p126 = por %p124, %p125
      %p127 = scmp.ne.s32.totalorder %s115, %s116
      %p128 = scmp.eq.s32.totalorder %s31, 3
      %p129 = por %p127, %p128
      %p131 = scmp.ne.s32.totalorder %s116, %s130
      %p132 = scmp.eq.s32.totalorder %s31, 0
      %p133 = por %p131, %p132
      %s134 = ssub.s32 %s33, %s40
      %p135 = scmp.eq.s32.totalorder %s134, 0
      %s137 = sadd.s32 %s136, 1
      %s138 = scalar_select %p135, %s136, %s137
      %p141 = pneg %p135
      %p142 = scmp.eq.s32.totalorder %s25, 3
      %p143 = por %p141, %p142
      %p144 = scmp.ne.s32.totalorder %s136, %s139
      %p145 = scmp.eq.s32.totalorder %s25, 0
      %p146 = por %p144, %p145
      %p147 = scmp.ne.s32.totalorder %s136, %s139
      %p148 = scmp.eq.s32.totalorder %s30, 3
      %p149 = por %p147, %p148
      %p150 = scmp.ne.s32.totalorder %s139, %s140
      %p151 = scmp.eq.s32.totalorder %s30, 0
      %p152 = por %p150, %p151
      %p153 = scmp.ne.s32.totalorder %s139, %s140
      %p154 = scmp.eq.s32.totalorder %s31, 3
      %p155 = por %p153, %p154
      %p157 = scmp.ne.s32.totalorder %s140, %s156
      %p158 = scmp.eq.s32.totalorder %s31, 0
      %p159 = por %p157, %p158
      %s160 = ssub.s32 %s33, %s40
      %p161 = scmp.eq.s32.totalorder %s160, 0
      %s163 = sadd.s32 %s162, 1
      %s164 = scalar_select %p161, %s162, %s163
      %p167 = pneg %p161
      %p168 = scmp.eq.s32.totalorder %s25, 3
      %p169 = por %p167, %p168
      %p170 = scmp.ne.s32.totalorder %s162, %s165
      %p171 = scmp.eq.s32.totalorder %s25, 0
      %p172 = por %p170, %p171
      %p173 = scmp.ne.s32.totalorder %s162, %s165
      %p174 = scmp.eq.s32.totalorder %s30, 3
      %p175 = por %p173, %p174
      %p176 = scmp.ne.s32.totalorder %s165, %s166
      %p177 = scmp.eq.s32.totalorder %s30, 0
      %p178 = por %p176, %p177
      %p179 = scmp.ne.s32.totalorder %s165, %s166
      %p180 = scmp.eq.s32.totalorder %s31, 3
      %p181 = por %p179, %p180
      %p183 = scmp.ne.s32.totalorder %s166, %s182
      %p184 = scmp.eq.s32.totalorder %s31, 0
      %p185 = por %p183, %p184
      %s186 = ssub.s32 %s33, %s40
      %p187 = scmp.eq.s32.totalorder %s186, 0
      %s189 = sadd.s32 %s188, 1
      %s190 = scalar_select %p187, %s188, %s189
      %p193 = pneg %p187
      %p194 = scmp.eq.s32.totalorder %s25, 3
      %p195 = por %p193, %p194
      %p196 = scmp.ne.s32.totalorder %s188, %s191
      %p197 = scmp.eq.s32.totalorder %s25, 0
      %p198 = por %p196, %p197
      %p199 = scmp.ne.s32.totalorder %s188, %s191
      %p200 = scmp.eq.s32.totalorder %s30, 3
      %p201 = por %p199, %p200
      %p202 = scmp.ne.s32.totalorder %s191, %s192
      %p203 = scmp.eq.s32.totalorder %s30, 0
      %p204 = por %p202, %p203
      %p205 = scmp.ne.s32.totalorder %s191, %s192
      %p206 = scmp.eq.s32.totalorder %s31, 3
      %p207 = por %p205, %p206
      %p209 = scmp.ne.s32.totalorder %s192, %s208
      %p210 = scmp.eq.s32.totalorder %s31, 0
      %p211 = por %p209, %p210
      %s212 = ssub.s32 %s33, %s40
      %p213 = scmp.eq.s32.totalorder %s212, 0
      %s215 = sadd.s32 %s214, 1
      %s216 = scalar_select %p213, %s214, %s215
      %p219 = pneg %p213
      %p220 = scmp.eq.s32.totalorder %s25, 3
      %p221 = por %p219, %p220
      %p222 = scmp.ne.s32.totalorder %s214, %s217
      %p223 = scmp.eq.s32.totalorder %s25, 0
      %p224 = por %p222, %p223
      %p225 = scmp.ne.s32.totalorder %s214, %s217
      %p226 = scmp.eq.s32.totalorder %s30, 3
      %p227 = por %p225, %p226
      %p228 = scmp.ne.s32.totalorder %s217, %s218
      %p229 = scmp.eq.s32.totalorder %s30, 0
      %p230 = por %p228, %p229
      %p231 = scmp.ne.s32.totalorder %s217, %s218
      %p232 = scmp.eq.s32.totalorder %s31, 3
      %p233 = por %p231, %p232
      %p235 = scmp.ne.s32.totalorder %s218, %s234
      %p236 = scmp.eq.s32.totalorder %s31, 0
      %p237 = por %p235, %p236
      %s238 = ssub.s32 %s33, %s40
      %p239 = scmp.eq.s32.totalorder %s238, 0
      %s241 = sadd.s32 %s240, 1
      %s242 = scalar_select %p239, %s240, %s241
      %p245 = pneg %p239
      %p246 = scmp.eq.s32.totalorder %s25, 3
      %p247 = por %p245, %p246
      %p248 = scmp.ne.s32.totalorder %s240, %s243
      %p249 = scmp.eq.s32.totalorder %s25, 0
      %p250 = por %p248, %p249
      %p251 = scmp.ne.s32.totalorder %s240, %s243
      %p252 = scmp.eq.s32.totalorder %s30, 3
      %p253 = por %p251, %p252
      %p254 = scmp.ne.s32.totalorder %s243, %s244
      %p255 = scmp.eq.s32.totalorder %s30, 0
      %p256 = por %p254, %p255
      %p257 = scmp.ne.s32.totalorder %s243, %s244
      %p258 = scmp.eq.s32.totalorder %s31, 3
      %p259 = por %p257, %p258
      %p261 = scmp.ne.s32.totalorder %s244, %s260
      %p262 = scmp.eq.s32.totalorder %s31, 0
      %p263 = por %p261, %p262
      %s264 = ssub.s32 %s33, %s40
      %p265 = scmp.eq.s32.totalorder %s264, 0
      %s267 = sadd.s32 %s266, 1
      %s268 = scalar_select %p265, %s266, %s267
      %p271 = pneg %p265
      %p272 = scmp.eq.s32.totalorder %s25, 3
      %p273 = por %p271, %p272
      %p274 = scmp.ne.s32.totalorder %s266, %s269
      %p275 = scmp.eq.s32.totalorder %s25, 0
      %p276 = por %p274, %p275
      %p277 = scmp.ne.s32.totalorder %s266, %s269
      %p278 = scmp.eq.s32.totalorder %s30, 3
      %p279 = por %p277, %p278
      %p280 = scmp.ne.s32.totalorder %s269, %s270
      %p281 = scmp.eq.s32.totalorder %s30, 0
      %p282 = por %p280, %p281
      %p283 = scmp.ne.s32.totalorder %s269, %s270
      %p284 = scmp.eq.s32.totalorder %s31, 3
      %p285 = por %p283, %p284
      %p287 = scmp.ne.s32.totalorder %s270, %s286
      %p288 = scmp.eq.s32.totalorder %s31, 0
      %p289 = por %p287, %p288
      %s290 = ssub.s32 %s33, %s40
      %p291 = scmp.eq.s32.totalorder %s290, 0
      %s293 = sadd.s32 %s292, 1
      %s294 = scalar_select %p291, %s292, %s293
      %p297 = pneg %p291
      %p298 = scmp.eq.s32.totalorder %s25, 3
      %p299 = por %p297, %p298
      %p300 = scmp.ne.s32.totalorder %s292, %s295
      %p301 = scmp.eq.s32.totalorder %s25, 0
      %p302 = por %p300, %p301
      %p303 = scmp.ne.s32.totalorder %s292, %s295
      %p304 = scmp.eq.s32.totalorder %s30, 3
      %p305 = por %p303, %p304
      %p306 = scmp.ne.s32.totalorder %s295, %s296
      %p307 = scmp.eq.s32.totalorder %s30, 0
      %p308 = por %p306, %p307
      %p309 = scmp.ne.s32.totalorder %s295, %s296
      %p310 = scmp.eq.s32.totalorder %s31, 3
      %p311 = por %p309, %p310
      %p313 = scmp.ne.s32.totalorder %s296, %s312
      %p314 = scmp.eq.s32.totalorder %s31, 0
      %p315 = por %p313, %p314
      %s316 = ssub.s32 %s33, %s40
      %p317 = scmp.eq.s32.totalorder %s316, 0
      %s319 = sadd.s32 %s318, 1
      %s320 = scalar_select %p317, %s318, %s319
      %p323 = pneg %p317
      %p324 = scmp.eq.s32.totalorder %s25, 3
      %p325 = por %p323, %p324
      %p326 = scmp.ne.s32.totalorder %s318, %s321
      %p327 = scmp.eq.s32.totalorder %s25, 0
      %p328 = por %p326, %p327
      %p329 = scmp.ne.s32.totalorder %s318, %s321
      %p330 = scmp.eq.s32.totalorder %s30, 3
      %p331 = por %p329, %p330
      %p332 = scmp.ne.s32.totalorder %s321, %s322
      %p333 = scmp.eq.s32.totalorder %s30, 0
      %p334 = por %p332, %p333
      %p335 = scmp.ne.s32.totalorder %s321, %s322
      %p336 = scmp.eq.s32.totalorder %s31, 3
      %p337 = por %p335, %p336
      %p339 = scmp.ne.s32.totalorder %s322, %s338
      %p340 = scmp.eq.s32.totalorder %s31, 0
      %p341 = por %p339, %p340
      %s342 = ssub.s32 %s33, %s40
      %p343 = scmp.eq.s32.totalorder %s342, 0
      %s345 = sadd.s32 %s344, 1
      %s346 = scalar_select %p343, %s344, %s345
      %p349 = pneg %p343
      %p350 = scmp.eq.s32.totalorder %s25, 3
      %p351 = por %p349, %p350
      %p352 = scmp.ne.s32.totalorder %s344, %s347
      %p353 = scmp.eq.s32.totalorder %s25, 0
      %p354 = por %p352, %p353
      %p355 = scmp.ne.s32.totalorder %s344, %s347
      %p356 = scmp.eq.s32.totalorder %s30, 3
      %p357 = por %p355, %p356
      %p358 = scmp.ne.s32.totalorder %s347, %s348
      %p359 = scmp.eq.s32.totalorder %s30, 0
      %p360 = por %p358, %p359
      %p361 = scmp.ne.s32.totalorder %s347, %s348
      %p362 = scmp.eq.s32.totalorder %s31, 3
      %p363 = por %p361, %p362
      %p365 = scmp.ne.s32.totalorder %s348, %s364
      %p366 = scmp.eq.s32.totalorder %s31, 0
      %p367 = por %p365, %p366
      %s368 = ssub.s32 %s33, %s40
      %p369 = scmp.eq.s32.totalorder %s368, 0
      %s371 = sadd.s32 %s370, 1
      %s372 = scalar_select %p369, %s370, %s371
      %p375 = pneg %p369
      %p376 = scmp.eq.s32.totalorder %s25, 3
      %p377 = por %p375, %p376
      %p378 = scmp.ne.s32.totalorder %s370, %s373
      %p379 = scmp.eq.s32.totalorder %s25, 0
      %p380 = por %p378, %p379
      %p381 = scmp.ne.s32.totalorder %s370, %s373
      %p382 = scmp.eq.s32.totalorder %s30, 3
      %p383 = por %p381, %p382
      %p384 = scmp.ne.s32.totalorder %s373, %s374
      %p385 = scmp.eq.s32.totalorder %s30, 0
      %p386 = por %p384, %p385
      %p387 = scmp.ne.s32.totalorder %s373, %s374
      %p388 = scmp.eq.s32.totalorder %s31, 3
      %p389 = por %p387, %p388
      %p391 = scmp.ne.s32.totalorder %s374, %s390
      %p392 = scmp.eq.s32.totalorder %s31, 0
      %p393 = por %p391, %p392
      %s394 = ssub.s32 %s33, %s40
      %p395 = scmp.eq.s32.totalorder %s394, 0
      %s397 = sadd.s32 %s396, 1
      %s398 = scalar_select %p395, %s396, %s397
      %p401 = pneg %p395
      %p402 = scmp.eq.s32.totalorder %s25, 3
      %p403 = por %p401, %p402
      %p404 = scmp.ne.s32.totalorder %s396, %s399
      %p405 = scmp.eq.s32.totalorder %s25, 0
      %p406 = por %p404, %p405
      %p407 = scmp.ne.s32.totalorder %s396, %s399
      %p408 = scmp.eq.s32.totalorder %s30, 3
      %p409 = por %p407, %p408
      %p410 = scmp.ne.s32.totalorder %s399, %s400
      %p411 = scmp.eq.s32.totalorder %s30, 0
      %p412 = por %p410, %p411
      %p413 = scmp.ne.s32.totalorder %s399, %s400
      %p414 = scmp.eq.s32.totalorder %s31, 3
      %p415 = por %p413, %p414
      %p417 = scmp.ne.s32.totalorder %s400, %s416
      %p418 = scmp.eq.s32.totalorder %s31, 0
      %p419 = por %p417, %p418
      %s420 = ssub.s32 %s33, %s40
      %p421 = scmp.eq.s32.totalorder %s420, 0
      %s423 = sadd.s32 %s422, 1
      %s424 = scalar_select %p421, %s422, %s423
      %p427 = pneg %p421
      %p428 = scmp.eq.s32.totalorder %s25, 3
      %p429 = por %p427, %p428
      %p430 = scmp.ne.s32.totalorder %s422, %s425
      %p431 = scmp.eq.s32.totalorder %s25, 0
      %p432 = por %p430, %p431
      %p433 = scmp.ne.s32.totalorder %s422, %s425
      %p434 = scmp.eq.s32.totalorder %s30, 3
      %p435 = por %p433, %p434
      %p436 = scmp.ne.s32.totalorder %s425, %s426
      %p437 = scmp.eq.s32.totalorder %s30, 0
      %p438 = por %p436, %p437
      %p439 = scmp.ne.s32.totalorder %s425, %s426
      %p440 = scmp.eq.s32.totalorder %s31, 3
      %p441 = por %p439, %p440
      %p443 = scmp.ne.s32.totalorder %s426, %s442
      %p444 = scmp.eq.s32.totalorder %s31, 0
      %p445 = por %p443, %p444
      %s446 = ssub.s32 %s32, %s44
      %p447 = scmp.eq.s32.totalorder %s446, 0
      %s449 = sadd.s32 %s448, 1
      %s450 = scalar_select %p447, %s448, %s449
      %p453 = pneg %p447
      %p454 = scmp.eq.s32.totalorder %s25, 3
      %p455 = por %p453, %p454
      %p456 = scmp.ne.s32.totalorder %s448, %s451
      %p457 = scmp.eq.s32.totalorder %s25, 0
      %p458 = por %p456, %p457
      %p459 = scmp.ne.s32.totalorder %s448, %s451
      %p460 = scmp.eq.s32.totalorder %s30, 3
      %p461 = por %p459, %p460
      %p462 = scmp.ne.s32.totalorder %s451, %s452
      %p463 = scmp.eq.s32.totalorder %s30, 0
      %p464 = por %p462, %p463
      %p465 = scmp.ne.s32.totalorder %s451, %s452
      %p466 = scmp.eq.s32.totalorder %s31, 3
      %p467 = por %p465, %p466
      %p469 = scmp.ne.s32.totalorder %s452, %s468
      %p470 = scmp.eq.s32.totalorder %s31, 0
      %p471 = por %p469, %p470
      %p472 = scmp.le.s32.totalorder 1, %s25
      %p473 = scmp.lt.s32.totalorder %s25, 5
      %p474 = pnand %p472, %p473
      %p475 = pneg %p474
      // Predicated region
      $region9: #{backbone_forward.1} parent=5 // pred_check
        _
      $region10: #{backbone_forward.1} parent=5 // pred_check_branch
        %477 = sbr.rel (%p474) target = $region12
      $region11: #{backbone_forward.1} parent=5 // pred_region
        %s478 = ssub.s32 %s25, 1
        // Predicated region
        $region13: #{backbone_forward.1} parent=11 // pred_check
          %p479 = pneg %p84
        $region14: #{backbone_forward.1} parent=11 // pred_check_branch
          %481 = sbr.rel (%p479) target = $region16
        $region15: #{backbone_forward.1} parent=11 // pred_region
          _
        $region16: #{backbone_forward.1} parent=11 // pred_fallthru
          _
        // Predicated region
        $region17: #{backbone_forward.1} parent=11 // pred_check
          %p482 = pneg %p105
        $region18: #{backbone_forward.1} parent=11 // pred_check_branch
          %484 = sbr.rel (%p482) target = $region20
        $region19: #{backbone_forward.1} parent=11 // pred_region
          _
        $region20: #{backbone_forward.1} parent=11 // pred_fallthru
          _
        // Predicated region
        $region21: #{backbone_forward.1} parent=11 // pred_check
          %p485 = pneg %p126
        $region22: #{backbone_forward.1} parent=11 // pred_check_branch
          %487 = sbr.rel (%p485) target = $region24
        $region23: #{backbone_forward.1} parent=11 // pred_region
          _
        $region24: #{backbone_forward.1} parent=11 // pred_fallthru
          _
      $region12: #{backbone_forward.1} parent=5 // pred_fallthru
        _
      %p488 = scmp.lt.s32.totalorder %s25, 4
      // Predicated region
      $region25: #{backbone_forward.1} parent=5 // pred_check
        %p489 = pneg %p488
      $region26: #{backbone_forward.1} parent=5 // pred_check_branch
        %491 = sbr.rel (%p489) target = $region28
      $region27: #{backbone_forward.1} parent=5 // pred_region
        // Predicated region
        $region29: #{backbone_forward.1} parent=27 // pred_check
          %p492 = pneg %p57
        $region30: #{backbone_forward.1} parent=27 // pred_check_branch
          %494 = sbr.rel (%p492) target = $region32
        $region31: #{backbone_forward.1} parent=27 // pred_region
          %p495 = scmp.lt.s32.totalorder %s32, 1
          %s496 = scalar_select %p495, %s32, 1
          %s497 = smul.addr %s496, 4
          %s498 = scalar_lea.vmem %s0, %s497
        $region32: #{backbone_forward.1} parent=27 // pred_fallthru
          _
        // Predicated region
        $region33: #{backbone_forward.1} parent=27 // pred_check
          %p499 = pneg %p146
        $region34: #{backbone_forward.1} parent=27 // pred_check_branch
          %501 = sbr.rel (%p499) target = $region36
        $region35: #{backbone_forward.1} parent=27 // pred_region
          %p502 = scmp.lt.s32.totalorder %s33, 1
          %s503 = scalar_select %p502, %s33, 1
          %s504 = smul.addr %s503, 4
          %s505 = smul.addr %s504, 4
          %s506 = scalar_lea.vmem %s4, %s505
        $region36: #{backbone_forward.1} parent=27 // pred_fallthru
          _
        // Predicated region
        $region37: #{backbone_forward.1} parent=27 // pred_check
          %p507 = pneg %p172
        $region38: #{backbone_forward.1} parent=27 // pred_check_branch
          %509 = sbr.rel (%p507) target = $region40
        $region39: #{backbone_forward.1} parent=27 // pred_region
          %p510 = scmp.lt.s32.totalorder %s33, 1
          %s511 = scalar_select %p510, %s33, 1
          %s512 = scalar_lea.vmem %s5, %s511
        $region40: #{backbone_forward.1} parent=27 // pred_fallthru
          _
        // Predicated region
        $region41: #{backbone_forward.1} parent=27 // pred_check
          %p513 = pneg %p198
        $region42: #{backbone_forward.1} parent=27 // pred_check_branch
          %515 = sbr.rel (%p513) target = $region44
        $region43: #{backbone_forward.1} parent=27 // pred_region
          %p516 = scmp.lt.s32.totalorder %s33, 1
          %s517 = scalar_select %p516, %s33, 1
          %s518 = smul.addr %s517, 4
          %s519 = smul.addr %s518, 4
          %s520 = scalar_lea.vmem %s6, %s519
        $region44: #{backbone_forward.1} parent=27 // pred_fallthru
          _
        // Predicated region
        $region45: #{backbone_forward.1} parent=27 // pred_check
          %p521 = pneg %p224
        $region46: #{backbone_forward.1} parent=27 // pred_check_branch
          %523 = sbr.rel (%p521) target = $region48
        $region47: #{backbone_forward.1} parent=27 // pred_region
          %p524 = scmp.lt.s32.totalorder %s33, 1
          %s525 = scalar_select %p524, %s33, 1
          %s526 = scalar_lea.vmem %s7, %s525
        $region48: #{backbone_forward.1} parent=27 // pred_fallthru
          _
        // Predicated region
        $region49: #{backbone_forward.1} parent=27 // pred_check
          %p527 = pneg %p250
        $region50: #{backbone_forward.1} parent=27 // pred_check_branch
          %529 = sbr.rel (%p527) target = $region52
        $region51: #{backbone_forward.1} parent=27 // pred_region
          %p530 = scmp.lt.s32.totalorder %s33, 1
          %s531 = scalar_select %p530, %s33, 1
          %s532 = scalar_lea.vmem %s8, %s531
        $region52: #{backbone_forward.1} parent=27 // pred_fallthru
          _
        // Predicated region
        $region53: #{backbone_forward.1} parent=27 // pred_check
          %p533 = pneg %p276
        $region54: #{backbone_forward.1} parent=27 // pred_check_branch
          %535 = sbr.rel (%p533) target = $region56
        $region55: #{backbone_forward.1} parent=27 // pred_region
          %p536 = scmp.lt.s32.totalorder %s33, 1
          %s537 = scalar_select %p536, %s33, 1
          %s538 = scalar_lea.vmem %s9, %s537
        $region56: #{backbone_forward.1} parent=27 // pred_fallthru
          _
        // Predicated region
        $region57: #{backbone_forward.1} parent=27 // pred_check
          %p539 = pneg %p302
        $region58: #{backbone_forward.1} parent=27 // pred_check_branch
          %541 = sbr.rel (%p539) target = $region60
        $region59: #{backbone_forward.1} parent=27 // pred_region
          %p542 = scmp.lt.s32.totalorder %s33, 1
          %s543 = scalar_select %p542, %s33, 1
          %s544 = smul.addr %s543, 4
          %s545 = smul.addr %s544, 4
          %s546 = scalar_lea.vmem %s10, %s545
        $region60: #{backbone_forward.1} parent=27 // pred_fallthru
          _
        // Predicated region
        $region61: #{backbone_forward.1} parent=27 // pred_check
          %p547 = pneg %p328
        $region62: #{backbone_forward.1} parent=27 // pred_check_branch
          %549 = sbr.rel (%p547) target = $region64
        $region63: #{backbone_forward.1} parent=27 // pred_region
          %p550 = scmp.lt.s32.totalorder %s33, 1
          %s551 = scalar_select %p550, %s33, 1
          %s552 = scalar_lea.vmem %s11, %s551
        $region64: #{backbone_forward.1} parent=27 // pred_fallthru
          _
        // Predicated region
        $region65: #{backbone_forward.1} parent=27 // pred_check
          %p553 = pneg %p354
        $region66: #{backbone_forward.1} parent=27 // pred_check_branch
          %555 = sbr.rel (%p553) target = $region68
        $region67: #{backbone_forward.1} parent=27 // pred_region
          %p556 = scmp.lt.s32.totalorder %s33, 1
          %s557 = scalar_select %p556, %s33, 1
          %s558 = smul.addr %s557, 8
          %s559 = smul.addr %s558, 4
          %s560 = scalar_lea.vmem %s12, %s559
        $region68: #{backbone_forward.1} parent=27 // pred_fallthru
          _
        // Predicated region
        $region69: #{backbone_forward.1} parent=27 // pred_check
          %p561 = pneg %p380
        $region70: #{backbone_forward.1} parent=27 // pred_check_branch
          %563 = sbr.rel (%p561) target = $region72
        $region71: #{backbone_forward.1} parent=27 // pred_region
          %p564 = scmp.lt.s32.totalorder %s33, 1
          %s565 = scalar_select %p564, %s33, 1
          %s566 = scalar_lea.vmem %s13, %s565
        $region72: #{backbone_forward.1} parent=27 // pred_fallthru
          _
        // Predicated region
        $region73: #{backbone_forward.1} parent=27 // pred_check
          %p567 = pneg %p406
        $region74: #{backbone_forward.1} parent=27 // pred_check_branch
          %569 = sbr.rel (%p567) target = $region76
        $region75: #{backbone_forward.1} parent=27 // pred_region
          %p570 = scmp.lt.s32.totalorder %s33, 1
          %s571 = scalar_select %p570, %s33, 1
          %s572 = scalar_lea.vmem %s14, %s571
        $region76: #{backbone_forward.1} parent=27 // pred_fallthru
          _
        // Predicated region
        $region77: #{backbone_forward.1} parent=27 // pred_check
          %p573 = pneg %p432
        $region78: #{backbone_forward.1} parent=27 // pred_check_branch
          %575 = sbr.rel (%p573) target = $region80
        $region79: #{backbone_forward.1} parent=27 // pred_region
          %p576 = scmp.lt.s32.totalorder %s33, 1
          %s577 = scalar_select %p576, %s33, 1
          %s578 = scalar_lea.vmem %s15, %s577
        $region80: #{backbone_forward.1} parent=27 // pred_fallthru
          _
      $region28: #{backbone_forward.1} parent=5 // pred_fallthru
        _
      %p579 = scmp.le.s32.totalorder 1, %s25
      %p580 = scmp.lt.s32.totalorder %s25, 5
      %p581 = pnand %p579, %p580
      %p582 = pneg %p581
      // Predicated region
      $region81: #{backbone_forward.1} parent=5 // pred_check
        _
      $region82: #{backbone_forward.1} parent=5 // pred_check_branch
        %584 = sbr.rel (%p581) target = $region84
      $region83: #{backbone_forward.1} parent=5 // pred_region
        %s585 = ssub.s32 %s25, 1
        %p586 = scmp.lt.s32.totalorder %s34, 1
        %s587 = scalar_select %p586, %s34, 1
        %s588 = smul.addr %s587, 4
        %s589 = scalar_lea.vmem %s0, %s588
        %p590 = pneg %p63
        %p591 = pneg %p60
        %p592 = pneg %p84
        %p593 = pneg %p81
        %p594 = pneg %p105
        %p595 = pneg %p102
        %p596 = pneg %p126
        %p597 = pneg %p123
        %p598 = scmp.lt.s32.totalorder %s35, 1
        %s599 = scalar_select %p598, %s35, 1
        %s600 = smul.addr %s599, 4
        %s601 = smul.addr %s600, 4
        %s602 = scalar_lea.vmem %s4, %s601
        %p603 = pneg %p152
        %p604 = pneg %p149
        %p605 = scmp.lt.s32.totalorder %s35, 1
        %s606 = scalar_select %p605, %s35, 1
        %s607 = scalar_lea.vmem %s5, %s606
        %p608 = pneg %p178
        %p609 = pneg %p175
        %p610 = scmp.lt.s32.totalorder %s35, 1
        %s611 = scalar_select %p610, %s35, 1
        %s612 = smul.addr %s611, 4
        %s613 = smul.addr %s612, 4
        %s614 = scalar_lea.vmem %s6, %s613
        %p615 = pneg %p204
        %p616 = pneg %p201
        %p617 = scmp.lt.s32.totalorder %s35, 1
        %s618 = scalar_select %p617, %s35, 1
        %s619 = scalar_lea.vmem %s7, %s618
        %p620 = pneg %p230
        %p621 = pneg %p227
        %p622 = scmp.lt.s32.totalorder %s35, 1
        %s623 = scalar_select %p622, %s35, 1
        %s624 = scalar_lea.vmem %s8, %s623
        %p625 = pneg %p256
        %p626 = pneg %p253
        %p627 = scmp.lt.s32.totalorder %s35, 1
        %s628 = scalar_select %p627, %s35, 1
        %s629 = scalar_lea.vmem %s9, %s628
        %p630 = pneg %p282
        %p631 = pneg %p279
        %p632 = scmp.lt.s32.totalorder %s35, 1
        %s633 = scalar_select %p632, %s35, 1
        %s634 = smul.addr %s633, 4
        %s635 = smul.addr %s634, 4
        %s636 = scalar_lea.vmem %s10, %s635
        %p637 = pneg %p308
        %p638 = pneg %p305
        %p639 = scmp.lt.s32.totalorder %s35, 1
        %s640 = scalar_select %p639, %s35, 1
        %s641 = scalar_lea.vmem %s11, %s640
        %p642 = pneg %p334
        %p643 = pneg %p331
        %p644 = scmp.lt.s32.totalorder %s35, 1
        %s645 = scalar_select %p644, %s35, 1
        %s646 = smul.addr %s645, 8
        %s647 = smul.addr %s646, 4
        %s648 = scalar_lea.vmem %s12, %s647
        %p649 = pneg %p360
        %p650 = pneg %p357
        %p651 = scmp.lt.s32.totalorder %s35, 1
        %s652 = scalar_select %p651, %s35, 1
        %s653 = scalar_lea.vmem %s13, %s652
        %p654 = pneg %p386
        %p655 = pneg %p383
        %p656 = scmp.lt.s32.totalorder %s35, 1
        %s657 = scalar_select %p656, %s35, 1
        %s658 = scalar_lea.vmem %s14, %s657
        %p659 = pneg %p412
        %p660 = pneg %p409
        %p661 = scmp.lt.s32.totalorder %s35, 1
        %s662 = scalar_select %p661, %s35, 1
        %s663 = scalar_lea.vmem %s15, %s662
        %p664 = pneg %p438
        %p665 = pneg %p435
        %p666 = pneg %p464
        %p667 = pneg %p461
        %s668 = sand.u32 %s451, 1
        %s669 = scalar_lea.sflag [#allocation5], %s668
        %s670 = sand.u32 %s451, 1
        %s671 = smul.addr %s670, 8
        %s672 = scalar_lea.vmem [#allocation4], %s671
        %p673 = scmp.lt.s32.totalorder %s34, 1
        %s674 = scalar_select %p673, %s34, 1
        %s675 = smul.addr %s674, 4
        %s676 = scalar_lea.vmem %s0, %s675
        %p677 = scmp.lt.s32.totalorder %s35, 1
        %s678 = scalar_select %p677, %s35, 1
        %s679 = smul.addr %s678, 4
        %s680 = smul.addr %s679, 4
        %s681 = scalar_lea.vmem %s4, %s680
        %p682 = scmp.lt.s32.totalorder %s35, 1
        %s683 = scalar_select %p682, %s35, 1
        %s684 = scalar_lea.vmem %s5, %s683
        %p685 = scmp.lt.s32.totalorder %s35, 1
        %s686 = scalar_select %p685, %s35, 1
        %s687 = smul.addr %s686, 4
        %s688 = smul.addr %s687, 4
        %s689 = scalar_lea.vmem %s6, %s688
        %p690 = scmp.lt.s32.totalorder %s35, 1
        %s691 = scalar_select %p690, %s35, 1
        %s692 = scalar_lea.vmem %s7, %s691
        %p693 = scmp.lt.s32.totalorder %s35, 1
        %s694 = scalar_select %p693, %s35, 1
        %s695 = scalar_lea.vmem %s8, %s694
        %p696 = scmp.lt.s32.totalorder %s35, 1
        %s697 = scalar_select %p696, %s35, 1
        %s698 = scalar_lea.vmem %s9, %s697
        %p699 = scmp.lt.s32.totalorder %s35, 1
        %s700 = scalar_select %p699, %s35, 1
        %s701 = smul.addr %s700, 4
        %s702 = smul.addr %s701, 4
        %s703 = scalar_lea.vmem %s10, %s702
        %p704 = scmp.lt.s32.totalorder %s35, 1
        %s705 = scalar_select %p704, %s35, 1
        %s706 = scalar_lea.vmem %s11, %s705
        %p707 = scmp.lt.s32.totalorder %s35, 1
        %s708 = scalar_select %p707, %s35, 1
        %s709 = smul.addr %s708, 8
        %s710 = smul.addr %s709, 4
        %s711 = scalar_lea.vmem %s12, %s710
        %p712 = scmp.lt.s32.totalorder %s35, 1
        %s713 = scalar_select %p712, %s35, 1
        %s714 = scalar_lea.vmem %s13, %s713
        %p715 = scmp.lt.s32.totalorder %s35, 1
        %s716 = scalar_select %p715, %s35, 1
        %s717 = scalar_lea.vmem %s14, %s716
        %p718 = scmp.lt.s32.totalorder %s35, 1
        %s719 = scalar_select %p718, %s35, 1
        %s720 = scalar_lea.vmem %s15, %s719
        %p722 = scmp.eq.s32.totalorder %s35, 0
        // Predicated region
        $region85: #{backbone_forward.1} parent=83 // pred_check
          %p723 = pneg %p722
        $region86: #{backbone_forward.1} parent=83 // pred_check_branch
          %725 = sbr.rel (%p723) target = $region88
        $region87: #{backbone_forward.1} parent=83 // pred_region
          %v726 = vld [vmem:[%s676] sm:$0xf]
          %v727 = vld [vmem:[%s1] sm:$0xf]
          %v728 = vld [vmem:[%s1 + $0x4] sm:$0xf]
          %v731 = vunpack.c.l.b16 %v727
          %v732 = vunpack.c.l.b16 %v728
          %v733 = vpack.c.b16 %v732, %v731
          %vm735 = vcmask 130048
          %v737 = vsel %vm735, %v726, 0
          %739 = vmatprep.subr.bf16.mxu0 0
          %740 = vmatpush1.bf16.msra.mxu0 %v733
          %741 = vmatprep.subr.bf16.mxu0 0
          %742 = vmatpush1.bf16.msra.mxu0 0
          %743 = vmatprep.subr.bf16.mxu0 0
          %744 = vmatpush1.bf16.msra.mxu0 0
          %745 = vmatprep.subr.bf16.mxu0 0
          %746 = vmatpush1.bf16.msra.mxu0 0
          %747 = vmatprep.subr.bf16.mxu0 0
          %748 = vmatpush1.bf16.msra.mxu0 0
          %749 = vmatprep.subr.bf16.mxu0 0
          %750 = vmatpush1.bf16.msra.mxu0 0
          %751 = vmatprep.subr.bf16.mxu0 0
          %752 = vmatpush1.bf16.msra.mxu0 0
          %753 = vmatprep.subr.bf16.mxu0 0
          %754 = vmatpush1.bf16.msra.mxu0 0
          %755 = vmatprep.subr.bf16.mxu0 0
          %756 = vmatpush1.bf16.msra.mxu0 0
          %757 = vmatprep.subr.bf16.mxu0 0
          %758 = vmatpush1.bf16.msra.mxu0 0
          %759 = vmatprep.subr.bf16.mxu0 0
          %760 = vmatpush1.bf16.msra.mxu0 0
          %761 = vmatprep.subr.bf16.mxu0 0
          %762 = vmatpush1.bf16.msra.mxu0 0
          %763 = vmatprep.subr.bf16.mxu0 0
          %764 = vmatpush1.bf16.msra.mxu0 0
          %765 = vmatprep.subr.bf16.mxu0 0
          %766 = vmatpush1.bf16.msra.mxu0 0
          %767 = vmatprep.subr.bf16.mxu0 0
          %768 = vmatpush1.bf16.msra.mxu0 0
          %769 = vmatprep.subr.bf16.mxu0 0
          %770 = vmatpush1.bf16.msra.mxu0 0
          %771 = vmatprep.mubr.bf16.mxu0 0
          %772 = vmatmul.mubr.bf16.gmra.mrb[0].mxu0 %v737
          %v773 = vpop.f32.mrb[0].mxu0
          %v774 = vadd.f32 0.0, %v773
          %v775 = vpop.f32.mrb[0].mxu0
          %v776 = vpop.f32.mrb[0].mxu0
          %v777 = vpop.f32.mrb[0].mxu0
          %778 = vdwg.mxu0
          %v779 = vld [vmem:[%s2] sm:$0xff]
          %v780 = vld [vmem:[%s3] sm:$0x1]
          %v782 = vlaneseq
          %v783 = vshrl.u32 %v782, 7
          %v784 = vsub.s32 0, %v783
          %v785 = vrot.slane %v780, %v784
          %v787 = vadd.f32 %v779, %v785
          %v788 = vadd.f32 %v774, %v787
          %vm789 = vcmask 261120
          %790 = vst.msk [vmem:[#allocation2] sm:$0xff] %vm789, %v788
        $region88: #{backbone_forward.1} parent=83 // pred_fallthru
          _
        %v791 = vld [vmem:[#allocation2] sm:$0xff]
        %v792 = vpack.c.bf16 %v791, %v791
        %v793 = vld [vmem:[%s681] sm:$0xf]
        %v794 = vld [vmem:[%s681 + $0x4] sm:$0xf]
        %v795 = vld [vmem:[%s681 + $0x8] sm:$0xf]
        %v796 = vld [vmem:[%s681 + $0xc] sm:$0xf]
        %v797 = vld [vmem:[%s684] sm:$0x1]
        %v799 = vlaneseq
        %v800 = vshrl.u32 %v799, 7
        %v801 = vsub.s32 0, %v800
        %v802 = vrot.slane %v797, %v801
        %v808 = vunpack.c.l.b16 %v793
        %v809 = vunpack.c.l.b16 %v794
        %v810 = vunpack.c.l.b16 %v795
        %v811 = vunpack.c.l.b16 %v796
        %v812 = vpack.c.b16 %v809, %v808
        %v813 = vpack.c.b16 %v811, %v810
        %vm816 = vcmask 261120
        %v818 = vsel %vm816, %v792, 0
        %820 = vmatprep.subr.bf16.mxu0 0
        %821 = vmatpush1.bf16.msra.mxu0 %v812
        %822 = vmatprep.subr.bf16.mxu0 0
        %823 = vmatpush1.bf16.msra.mxu0 %v813
        %824 = vmatprep.subr.bf16.mxu0 0
        %825 = vmatpush1.bf16.msra.mxu0 0
        %826 = vmatprep.subr.bf16.mxu0 0
        %827 = vmatpush1.bf16.msra.mxu0 0
        %828 = vmatprep.subr.bf16.mxu0 0
        %829 = vmatpush1.bf16.msra.mxu0 0
        %830 = vmatprep.subr.bf16.mxu0 0
        %831 = vmatpush1.bf16.msra.mxu0 0
        %832 = vmatprep.subr.bf16.mxu0 0
        %833 = vmatpush1.bf16.msra.mxu0 0
        %834 = vmatprep.subr.bf16.mxu0 0
        %835 = vmatpush1.bf16.msra.mxu0 0
        %836 = vmatprep.subr.bf16.mxu0 0
        %837 = vmatpush1.bf16.msra.mxu0 0
        %838 = vmatprep.subr.bf16.mxu0 0
        %839 = vmatpush1.bf16.msra.mxu0 0
        %840 = vmatprep.subr.bf16.mxu0 0
        %841 = vmatpush1.bf16.msra.mxu0 0
        %842 = vmatprep.subr.bf16.mxu0 0
        %843 = vmatpush1.bf16.msra.mxu0 0
        %844 = vmatprep.subr.bf16.mxu0 0
        %845 = vmatpush1.bf16.msra.mxu0 0
        %846 = vmatprep.subr.bf16.mxu0 0
        %847 = vmatpush1.bf16.msra.mxu0 0
        %848 = vmatprep.subr.bf16.mxu0 0
        %849 = vmatpush1.bf16.msra.mxu0 0
        %850 = vmatprep.subr.bf16.mxu0 0
        %851 = vmatpush1.bf16.msra.mxu0 0
        %852 = vmatprep.mubr.bf16.mxu0 0
        %853 = vmatmul.mubr.bf16.gmra.mrb[0].mxu0 %v818
        %v854 = vpop.f32.mrb[0].mxu0
        %v855 = vadd.f32 %v802, %v854
        %v856 = vpop.f32.mrb[0].mxu0
        %v857 = vpop.f32.mrb[0].mxu0
        %v858 = vpop.f32.mrb[0].mxu0
        %859 = vdwg.mxu0
        %v860 = vpack.c.bf16 %v855, %v855
        %862 = vrot.lane.b32.xlu0 %v860, 96
        %v863 = vpop.permute.xlu0 %862
        %vm864 = vcmask 64512
        %v866 = vsel %vm864, %v860, 0
        %v869 = vsel %vm864, %v863, 0
        %871 = vmatprep.subr.bf16.mxu0 0
        %872 = vmatpush1.bf16.xpose.msra.mxu0 %v869
        %873 = vmatprep.subr.bf16.mxu0 0
        %874 = vmatpush1.bf16.xpose.msra.mxu0 0
        %875 = vmatprep.subr.bf16.mxu0 0
        %876 = vmatpush1.bf16.xpose.msra.mxu0 0
        %877 = vmatprep.subr.bf16.mxu0 0
        %878 = vmatpush1.bf16.xpose.msra.mxu0 0
        %879 = vmatprep.subr.bf16.mxu0 0
        %880 = vmatpush1.bf16.xpose.msra.mxu0 0
        %881 = vmatprep.subr.bf16.mxu0 0
        %882 = vmatpush1.bf16.xpose.msra.mxu0 0
        %883 = vmatprep.subr.bf16.mxu0 0
        %884 = vmatpush1.bf16.xpose.msra.mxu0 0
        %885 = vmatprep.subr.bf16.mxu0 0
        %886 = vmatpush1.bf16.xpose.msra.mxu0 0
        %887 = vmatprep.subr.bf16.mxu0 0
        %888 = vmatpush1.bf16.xpose.msra.mxu0 0
        %889 = vmatprep.subr.bf16.mxu0 0
        %890 = vmatpush1.bf16.xpose.msra.mxu0 0
        %891 = vmatprep.subr.bf16.mxu0 0
        %892 = vmatpush1.bf16.xpose.msra.mxu0 0
        %893 = vmatprep.subr.bf16.mxu0 0
        %894 = vmatpush1.bf16.xpose.msra.mxu0 0
        %895 = vmatprep.subr.bf16.mxu0 0
        %896 = vmatpush1.bf16.xpose.msra.mxu0 0
        %897 = vmatprep.subr.bf16.mxu0 0
        %898 = vmatpush1.bf16.xpose.msra.mxu0 0
        %899 = vmatprep.subr.bf16.mxu0 0
        %900 = vmatpush1.bf16.xpose.msra.mxu0 0
        %901 = vmatprep.subr.bf16.mxu0 0
        %902 = vmatpush1.bf16.xpose.msra.mxu0 0
        %903 = vmatprep.mubr.bf16.mxu0 0
        %904 = vmatmul.mubr.bf16.gmra.mrb[0].mxu0 %v866
        %v905 = vpop.f32.mrb[0].mxu0
        %v906 = vadd.f32 0.0, %v905
        %v907 = vpop.f32.mrb[0].mxu0
        %v908 = vpop.f32.mrb[0].mxu0
        %v909 = vpop.f32.mrb[0].mxu0
        %910 = vdwg.mxu0
        %v911 = vsel %vm864, %v906, -inf
        %912 = vmax.xlane.f32.xlu0 %v911
        %v913 = vpop.xlane.xlu0 %912
        %v914 = vsub.f32 %v906, %v913
        %v915 = vmul.f32 %v914, 1.442695
        %v916 = vpow.pop %v915
        %v917 = vsel %vm864, %v916, 0.0
        %918 = vadd.xlane.f32.xlu0 %v917
        %v919 = vpop.xlane.xlu0 %918
        %v920 = vrcp.pop %v919
        %v921 = vmul.f32 %v916, %v920
        %v922 = vpack.c.bf16 %v921, %v921
        %923 = vrot.lane.b32.xlu0 %v860, 64
        %v924 = vpop.permute.xlu0 %923
        %v926 = vsel %vm864, %v922, 0
        %vm928 = vcmask 1043456
        %v930 = vsel %vm928, %v924, 0
        %932 = vmatprep.subr.bf16.mxu0 0
        %933 = vmatpush1.bf16.msra.mxu0 %v930
        %934 = vmatprep.subr.bf16.mxu0 0
        %935 = vmatpush1.bf16.msra.mxu0 0
        %936 = vmatprep.subr.bf16.mxu0 0
        %937 = vmatpush1.bf16.msra.mxu0 0
        %938 = vmatprep.subr.bf16.mxu0 0
        %939 = vmatpush1.bf16.msra.mxu0 0
        %940 = vmatprep.subr.bf16.mxu0 0
        %941 = vmatpush1.bf16.msra.mxu0 0
        %942 = vmatprep.subr.bf16.mxu0 0
        %943 = vmatpush1.bf16.msra.mxu0 0
        %944 = vmatprep.subr.bf16.mxu0 0
        %945 = vmatpush1.bf16.msra.mxu0 0
        %946 = vmatprep.subr.bf16.mxu0 0
        %947 = vmatpush1.bf16.msra.mxu0 0
        %948 = vmatprep.subr.bf16.mxu0 0
        %949 = vmatpush1.bf16.msra.mxu0 0
        %950 = vmatprep.subr.bf16.mxu0 0
        %951 = vmatpush1.bf16.msra.mxu0 0
        %952 = vmatprep.subr.bf16.mxu0 0
        %953 = vmatpush1.bf16.msra.mxu0 0
        %954 = vmatprep.subr.bf16.mxu0 0
        %955 = vmatpush1.bf16.msra.mxu0 0
        %956 = vmatprep.subr.bf16.mxu0 0
        %957 = vmatpush1.bf16.msra.mxu0 0
        %958 = vmatprep.subr.bf16.mxu0 0
        %959 = vmatpush1.bf16.msra.mxu0 0
        %960 = vmatprep.subr.bf16.mxu0 0
        %961 = vmatpush1.bf16.msra.mxu0 0
        %962 = vmatprep.subr.bf16.mxu0 0
        %963 = vmatpush1.bf16.msra.mxu0 0
        %964 = vmatprep.mubr.bf16.mxu0 0
        %965 = vmatmul.mubr.bf16.gmra.mrb[0].mxu0 %v926
        %v966 = vpop.f32.mrb[0].mxu0
        %v967 = vadd.f32 0.0, %v966
        %v968 = vpop.f32.mrb[0].mxu0
        %v969 = vpop.f32.mrb[0].mxu0
        %v970 = vpop.f32.mrb[0].mxu0
        %971 = vdwg.mxu0
        %v972 = vpack.c.bf16 %v967, %v967
        %vm973 = vcmask 60416
        %974 = vst.msk [vmem:[#allocation3] sm:$0xf] %vm973, %v972
        %975 = vrot.lane.b32.xlu0 %v860, 120
        %v976 = vpop.permute.xlu0 %975
        %977 = vrot.lane.b32.xlu0 %v860, 88
        %v978 = vpop.permute.xlu0 %977
        %v980 = vsel %vm864, %v976, 0
        %v983 = vsel %vm864, %v978, 0
        %985 = vmatprep.subr.bf16.mxu0 0
        %986 = vmatpush1.bf16.xpose.msra.mxu0 %v983
        %987 = vmatprep.subr.bf16.mxu0 0
        %988 = vmatpush1.bf16.xpose.msra.mxu0 0
        %989 = vmatprep.subr.bf16.mxu0 0
        %990 = vmatpush1.bf16.xpose.msra.mxu0 0
        %991 = vmatprep.subr.bf16.mxu0 0
        %992 = vmatpush1.bf16.xpose.msra.mxu0 0
        %993 = vmatprep.subr.bf16.mxu0 0
        %994 = vmatpush1.bf16.xpose.msra.mxu0 0
        %995 = vmatprep.subr.bf16.mxu0 0
        %996 = vmatpush1.bf16.xpose.msra.mxu0 0
        %997 = vmatprep.subr.bf16.mxu0 0
        %998 = vmatpush1.bf16.xpose.msra.mxu0 0
        %999 = vmatprep.subr.bf16.mxu0 0
        %1000 = vmatpush1.bf16.xpose.msra.mxu0 0
        %1001 = vmatprep.subr.bf16.mxu0 0
        %1002 = vmatpush1.bf16.xpose.msra.mxu0 0
        %1003 = vmatprep.subr.bf16.mxu0 0
        %1004 = vmatpush1.bf16.xpose.msra.mxu0 0
        %1005 = vmatprep.subr.bf16.mxu0 0
        %1006 = vmatpush1.bf16.xpose.msra.mxu0 0
        %1007 = vmatprep.subr.bf16.mxu0 0
        %1008 = vmatpush1.bf16.xpose.msra.mxu0 0
        %1009 = vmatprep.subr.bf16.mxu0 0
        %1010 = vmatpush1.bf16.xpose.msra.mxu0 0
        %1011 = vmatprep.subr.bf16.mxu0 0
        %1012 = vmatpush1.bf16.xpose.msra.mxu0 0
        %1013 = vmatprep.subr.bf16.mxu0 0
        %1014 = vmatpush1.bf16.xpose.msra.mxu0 0
        %1015 = vmatprep.subr.bf16.mxu0 0
        %1016 = vmatpush1.bf16.xpose.msra.mxu0 0
        %1017 = vmatprep.mubr.bf16.mxu0 0
        %1018 = vmatmul.mubr.bf16.gmra.mrb[0].mxu0 %v980
        %v1019 = vpop.f32.mrb[0].mxu0
        %v1020 = vadd.f32 0.0, %v1019
        %v1021 = vpop.f32.mrb[0].mxu0
        %v1022 = vpop.f32.mrb[0].mxu0
        %v1023 = vpop.f32.mrb[0].mxu0
        %1024 = vdwg.mxu0
        %v1025 = vsel %vm864, %v1020, -inf
        %1026 = vmax.xlane.f32.xlu0 %v1025
        %v1027 = vpop.xlane.xlu0 %1026
        %v1028 = vsub.f32 %v1020, %v1027
        %v1029 = vmul.f32 %v1028, 1.442695
        %v1030 = vpow.pop %v1029
        %v1031 = vsel %vm864, %v1030, 0.0
        %1032 = vadd.xlane.f32.xlu0 %v1031
        %v1033 = vpop.xlane.xlu0 %1032
        %v1034 = vrcp.pop %v1033
        %v1035 = vmul.f32 %v1030, %v1034
        %v1036 = vpack.c.bf16 %v1035, %v1035
        %1037 = vrot.lane.b32.xlu0 %v860, 56
        %v1038 = vpop.permute.xlu0 %1037
        %v1040 = vsel %vm864, %v1036, 0
        %v1043 = vsel %vm928, %v1038, 0
        %1045 = vmatprep.subr.bf16.mxu0 0
        %1046 = vmatpush1.bf16.msra.mxu0 %v1043
        %1047 = vmatprep.subr.bf16.mxu0 0
        %1048 = vmatpush1.bf16.msra.mxu0 0
        %1049 = vmatprep.subr.bf16.mxu0 0
        %1050 = vmatpush1.bf16.msra.mxu0 0
        %1051 = vmatprep.subr.bf16.mxu0 0
        %1052 = vmatpush1.bf16.msra.mxu0 0
        %1053 = vmatprep.subr.bf16.mxu0 0
        %1054 = vmatpush1.bf16.msra.mxu0 0
        %1055 = vmatprep.subr.bf16.mxu0 0
        %1056 = vmatpush1.bf16.msra.mxu0 0
        %1057 = vmatprep.subr.bf16.mxu0 0
        %1058 = vmatpush1.bf16.msra.mxu0 0
        %1059 = vmatprep.subr.bf16.mxu0 0
        %1060 = vmatpush1.bf16.msra.mxu0 0
        %1061 = vmatprep.subr.bf16.mxu0 0
        %1062 = vmatpush1.bf16.msra.mxu0 0
        %1063 = vmatprep.subr.bf16.mxu0 0
        %1064 = vmatpush1.bf16.msra.mxu0 0
        %1065 = vmatprep.subr.bf16.mxu0 0
        %1066 = vmatpush1.bf16.msra.mxu0 0
        %1067 = vmatprep.subr.bf16.mxu0 0
        %1068 = vmatpush1.bf16.msra.mxu0 0
        %1069 = vmatprep.subr.bf16.mxu0 0
        %1070 = vmatpush1.bf16.msra.mxu0 0
        %1071 = vmatprep.subr.bf16.mxu0 0
        %1072 = vmatpush1.bf16.msra.mxu0 0
        %1073 = vmatprep.subr.bf16.mxu0 0
        %1074 = vmatpush1.bf16.msra.mxu0 0
        %1075 = vmatprep.subr.bf16.mxu0 0
        %1076 = vmatpush1.bf16.msra.mxu0 0
        %1077 = vmatprep.mubr.bf16.mxu0 0
        %1078 = vmatmul.mubr.bf16.gmra.mrb[0].mxu0 %v1040
        %v1079 = vpop.f32.mrb[0].mxu0
        %v1080 = vadd.f32 0.0, %v1079
        %v1081 = vpop.f32.mrb[0].mxu0
        %v1082 = vpop.f32.mrb[0].mxu0
        %v1083 = vpop.f32.mrb[0].mxu0
        %1084 = vdwg.mxu0
        %v1085 = vpack.c.bf16 %v1080, %v1080
        %v1087 = vunpack.c.l.b16 %v1085
        %v1088 = vpack.c.b16 %v1087, %v1087
        %1089 = vrot.lane.b32.xlu0 %v1088, 8
        %v1090 = vpop.permute.xlu0 %1089
        %vm1092 = vcmask 126016
        %1093 = vst.msk [vmem:[#allocation3] sm:$0xf] %vm1092, %v1090
        %1094 = vrot.lane.b32.xlu0 %v860, 112
        %v1095 = vpop.permute.xlu0 %1094
        %1096 = vrot.lane.b32.xlu0 %v860, 80
        %v1097 = vpop.permute.xlu0 %1096
        %v1099 = vsel %vm864, %v1095, 0
        %v1102 = vsel %vm864, %v1097, 0
        %1104 = vmatprep.subr.bf16.mxu0 0
        %1105 = vmatpush1.bf16.xpose.msra.mxu0 %v1102
        %1106 = vmatprep.subr.bf16.mxu0 0
        %1107 = vmatpush1.bf16.xpose.msra.mxu0 0
        %1108 = vmatprep.subr.bf16.mxu0 0
        %1109 = vmatpush1.bf16.xpose.msra.mxu0 0
        %1110 = vmatprep.subr.bf16.mxu0 0
        %1111 = vmatpush1.bf16.xpose.msra.mxu0 0
        %1112 = vmatprep.subr.bf16.mxu0 0
        %1113 = vmatpush1.bf16.xpose.msra.mxu0 0
        %1114 = vmatprep.subr.bf16.mxu0 0
        %1115 = vmatpush1.bf16.xpose.msra.mxu0 0
        %1116 = vmatprep.subr.bf16.mxu0 0
        %1117 = vmatpush1.bf16.xpose.msra.mxu0 0
        %1118 = vmatprep.subr.bf16.mxu0 0
        %1119 = vmatpush1.bf16.xpose.msra.mxu0 0
        %1120 = vmatprep.subr.bf16.mxu0 0
        %1121 = vmatpush1.bf16.xpose.msra.mxu0 0
        %1122 = vmatprep.subr.bf16.mxu0 0
        %1123 = vmatpush1.bf16.xpose.msra.mxu0 0
        %1124 = vmatprep.subr.bf16.mxu0 0
        %1125 = vmatpush1.bf16.xpose.msra.mxu0 0
        %1126 = vmatprep.subr.bf16.mxu0 0
        %1127 = vmatpush1.bf16.xpose.msra.mxu0 0
        %1128 = vmatprep.subr.bf16.mxu0 0
        %1129 = vmatpush1.bf16.xpose.msra.mxu0 0
        %1130 = vmatprep.subr.bf16.mxu0 0
        %1131 = vmatpush1.bf16.xpose.msra.mxu0 0
        %1132 = vmatprep.subr.bf16.mxu0 0
        %1133 = vmatpush1.bf16.xpose.msra.mxu0 0
        %1134 = vmatprep.subr.bf16.mxu0 0
        %1135 = vmatpush1.bf16.xpose.msra.mxu0 0
        %1136 = vmatprep.mubr.bf16.mxu0 0
        %1137 = vmatmul.mubr.bf16.gmra.mrb[0].mxu0 %v1099
        %v1138 = vpop.f32.mrb[0].mxu0
        %v1139 = vadd.f32 0.0, %v1138
        %v1140 = vpop.f32.mrb[0].mxu0
        %v1141 = vpop.f32.mrb[0].mxu0
        %v1142 = vpop.f32.mrb[0].mxu0
        %1143 = vdwg.mxu0
        %v1144 = vsel %vm864, %v1139, -inf
        %1145 = vmax.xlane.f32.xlu0 %v1144
        %v1146 = vpop.xlane.xlu0 %1145
        %v1147 = vsub.f32 %v1139, %v1146
        %v1148 = vmul.f32 %v1147, 1.442695
        %v1149 = vpow.pop %v1148
        %v1150 = vsel %vm864, %v1149, 0.0
        %1151 = vadd.xlane.f32.xlu0 %v1150
        %v1152 = vpop.xlane.xlu0 %1151
        %v1153 = vrcp.pop %v1152
        %v1154 = vmul.f32 %v1149, %v1153
        %v1155 = vpack.c.bf16 %v1154, %v1154
        %1156 = vrot.lane.b32.xlu0 %v860, 48
        %v1157 = vpop.permute.xlu0 %1156
        %v1159 = vsel %vm864, %v1155, 0
        %v1162 = vsel %vm928, %v1157, 0
        %1164 = vmatprep.subr.bf16.mxu0 0
        %1165 = vmatpush1.bf16.msra.mxu0 %v1162
        %1166 = vmatprep.subr.bf16.mxu0 0
        %1167 = vmatpush1.bf16.msra.mxu0 0
        %1168 = vmatprep.subr.bf16.mxu0 0
        %1169 = vmatpush1.bf16.msra.mxu0 0
        %1170 = vmatprep.subr.bf16.mxu0 0
        %1171 = vmatpush1.bf16.msra.mxu0 0
        %1172 = vmatprep.subr.bf16.mxu0 0
        %1173 = vmatpush1.bf16.msra.mxu0 0
        %1174 = vmatprep.subr.bf16.mxu0 0
        %1175 = vmatpush1.bf16.msra.mxu0 0
        %1176 = vmatprep.subr.bf16.mxu0 0
        %1177 = vmatpush1.bf16.msra.mxu0 0
        %1178 = vmatprep.subr.bf16.mxu0 0
        %1179 = vmatpush1.bf16.msra.mxu0 0
        %1180 = vmatprep.subr.bf16.mxu0 0
        %1181 = vmatpush1.bf16.msra.mxu0 0
        %1182 = vmatprep.subr.bf16.mxu0 0
        %1183 = vmatpush1.bf16.msra.mxu0 0
        %1184 = vmatprep.subr.bf16.mxu0 0
        %1185 = vmatpush1.bf16.msra.mxu0 0
        %1186 = vmatprep.subr.bf16.mxu0 0
        %1187 = vmatpush1.bf16.msra.mxu0 0
        %1188 = vmatprep.subr.bf16.mxu0 0
        %1189 = vmatpush1.bf16.msra.mxu0 0
        %1190 = vmatprep.subr.bf16.mxu0 0
        %1191 = vmatpush1.bf16.msra.mxu0 0
        %1192 = vmatprep.subr.bf16.mxu0 0
        %1193 = vmatpush1.bf16.msra.mxu0 0
        %1194 = vmatprep.subr.bf16.mxu0 0
        %1195 = vmatpush1.bf16.msra.mxu0 0
        %1196 = vmatprep.mubr.bf16.mxu0 0
        %1197 = vmatmul.mubr.bf16.gmra.mrb[0].mxu0 %v1159
        %v1198 = vpop.f32.mrb[0].mxu0
        %v1199 = vadd.f32 0.0, %v1198
        %v1200 = vpop.f32.mrb[0].mxu0
        %v1201 = vpop.f32.mrb[0].mxu0
        %v1202 = vpop.f32.mrb[0].mxu0
        %1203 = vdwg.mxu0
        %v1204 = vpack.c.bf16 %v1199, %v1199
        %v1206 = vunpack.c.l.b16 %v1204
        %v1207 = vpack.c.b16 %v1206, %v1206
        %1208 = vrot.lane.b32.xlu0 %v1207, 16
        %v1209 = vpop.permute.xlu0 %1208
        %vm1211 = vcmask 191616
        %1212 = vst.msk [vmem:[#allocation3] sm:$0xf] %vm1211, %v1209
        %1213 = vrot.lane.b32.xlu0 %v860, 104
        %v1214 = vpop.permute.xlu0 %1213
        %1215 = vrot.lane.b32.xlu0 %v860, 72
        %v1216 = vpop.permute.xlu0 %1215
        %v1218 = vsel %vm864, %v1214, 0
        %v1221 = vsel %vm864, %v1216, 0
        %1223 = vmatprep.subr.bf16.mxu0 0
        %1224 = vmatpush1.bf16.xpose.msra.mxu0 %v1221
        %1225 = vmatprep.subr.bf16.mxu0 0
        %1226 = vmatpush1.bf16.xpose.msra.mxu0 0
        %1227 = vmatprep.subr.bf16.mxu0 0
        %1228 = vmatpush1.bf16.xpose.msra.mxu0 0
        %1229 = vmatprep.subr.bf16.mxu0 0
        %1230 = vmatpush1.bf16.xpose.msra.mxu0 0
        %1231 = vmatprep.subr.bf16.mxu0 0
        %1232 = vmatpush1.bf16.xpose.msra.mxu0 0
        %1233 = vmatprep.subr.bf16.mxu0 0
        %1234 = vmatpush1.bf16.xpose.msra.mxu0 0
        %1235 = vmatprep.subr.bf16.mxu0 0
        %1236 = vmatpush1.bf16.xpose.msra.mxu0 0
        %1237 = vmatprep.subr.bf16.mxu0 0
        %1238 = vmatpush1.bf16.xpose.msra.mxu0 0
        %1239 = vmatprep.subr.bf16.mxu0 0
        %1240 = vmatpush1.bf16.xpose.msra.mxu0 0
        %1241 = vmatprep.subr.bf16.mxu0 0
        %1242 = vmatpush1.bf16.xpose.msra.mxu0 0
        %1243 = vmatprep.subr.bf16.mxu0 0
        %1244 = vmatpush1.bf16.xpose.msra.mxu0 0
        %1245 = vmatprep.subr.bf16.mxu0 0
        %1246 = vmatpush1.bf16.xpose.msra.mxu0 0
        %1247 = vmatprep.subr.bf16.mxu0 0
        %1248 = vmatpush1.bf16.xpose.msra.mxu0 0
        %1249 = vmatprep.subr.bf16.mxu0 0
        %1250 = vmatpush1.bf16.xpose.msra.mxu0 0
        %1251 = vmatprep.subr.bf16.mxu0 0
        %1252 = vmatpush1.bf16.xpose.msra.mxu0 0
        %1253 = vmatprep.subr.bf16.mxu0 0
        %1254 = vmatpush1.bf16.xpose.msra.mxu0 0
        %1255 = vmatprep.mubr.bf16.mxu0 0
        %1256 = vmatmul.mubr.bf16.gmra.mrb[0].mxu0 %v1218
        %v1257 = vpop.f32.mrb[0].mxu0
        %v1258 = vadd.f32 0.0, %v1257
        %v1259 = vpop.f32.mrb[0].mxu0
        %v1260 = vpop.f32.mrb[0].mxu0
        %v1261 = vpop.f32.mrb[0].mxu0
        %1262 = vdwg.mxu0
        %v1263 = vsel %vm864, %v1258, -inf
        %1264 = vmax.xlane.f32.xlu0 %v1263
        %v1265 = vpop.xlane.xlu0 %1264
        %v1266 = vsub.f32 %v1258, %v1265
        %v1267 = vmul.f32 %v1266, 1.442695
        %v1268 = vpow.pop %v1267
        %v1269 = vsel %vm864, %v1268, 0.0
        %1270 = vadd.xlane.f32.xlu0 %v1269
        %v1271 = vpop.xlane.xlu0 %1270
        %v1272 = vrcp.pop %v1271
        %v1273 = vmul.f32 %v1268, %v1272
        %v1274 = vpack.c.bf16 %v1273, %v1273
        %1275 = vrot.lane.b32.xlu0 %v860, 40
        %v1276 = vpop.permute.xlu0 %1275
        %v1278 = vsel %vm864, %v1274, 0
        %v1281 = vsel %vm928, %v1276, 0
        %1283 = vmatprep.subr.bf16.mxu0 0
        %1284 = vmatpush1.bf16.msra.mxu0 %v1281
        %1285 = vmatprep.subr.bf16.mxu0 0
        %1286 = vmatpush1.bf16.msra.mxu0 0
        %1287 = vmatprep.subr.bf16.mxu0 0
        %1288 = vmatpush1.bf16.msra.mxu0 0
        %1289 = vmatprep.subr.bf16.mxu0 0
        %1290 = vmatpush1.bf16.msra.mxu0 0
        %1291 = vmatprep.subr.bf16.mxu0 0
        %1292 = vmatpush1.bf16.msra.mxu0 0
        %1293 = vmatprep.subr.bf16.mxu0 0
        %1294 = vmatpush1.bf16.msra.mxu0 0
        %1295 = vmatprep.subr.bf16.mxu0 0
        %1296 = vmatpush1.bf16.msra.mxu0 0
        %1297 = vmatprep.subr.bf16.mxu0 0
        %1298 = vmatpush1.bf16.msra.mxu0 0
        %1299 = vmatprep.subr.bf16.mxu0 0
        %1300 = vmatpush1.bf16.msra.mxu0 0
        %1301 = vmatprep.subr.bf16.mxu0 0
        %1302 = vmatpush1.bf16.msra.mxu0 0
        %1303 = vmatprep.subr.bf16.mxu0 0
        %1304 = vmatpush1.bf16.msra.mxu0 0
        %1305 = vmatprep.subr.bf16.mxu0 0
        %1306 = vmatpush1.bf16.msra.mxu0 0
        %1307 = vmatprep.subr.bf16.mxu0 0
        %1308 = vmatpush1.bf16.msra.mxu0 0
        %1309 = vmatprep.subr.bf16.mxu0 0
        %1310 = vmatpush1.bf16.msra.mxu0 0
        %1311 = vmatprep.subr.bf16.mxu0 0
        %1312 = vmatpush1.bf16.msra.mxu0 0
        %1313 = vmatprep.subr.bf16.mxu0 0
        %1314 = vmatpush1.bf16.msra.mxu0 0
        %1315 = vmatprep.mubr.bf16.mxu0 0
        %1316 = vmatmul.mubr.bf16.gmra.mrb[0].mxu0 %v1278
        %v1317 = vpop.f32.mrb[0].mxu0
        %v1318 = vadd.f32 0.0, %v1317
        %v1319 = vpop.f32.mrb[0].mxu0
        %v1320 = vpop.f32.mrb[0].mxu0
        %v1321 = vpop.f32.mrb[0].mxu0
        %1322 = vdwg.mxu0
        %v1323 = vpack.c.bf16 %v1318, %v1318
        %v1325 = vunpack.c.l.b16 %v1323
        %v1326 = vpack.c.b16 %v1325, %v1325
        %1327 = vrot.lane.b32.xlu0 %v1326, 24
        %v1328 = vpop.permute.xlu0 %1327
        %vm1330 = vcmask 257216
        %1331 = vst.msk [vmem:[#allocation3] sm:$0xf] %vm1330, %v1328
        %v1332 = vld [vmem:[#allocation3] sm:$0xf]
        %v1333 = vld [vmem:[%s689] sm:$0xf]
        %v1334 = vld [vmem:[%s689 + $0x4] sm:$0xf]
        %v1335 = vld [vmem:[%s689 + $0x8] sm:$0xf]
        %v1336 = vld [vmem:[%s689 + $0xc] sm:$0xf]
        %v1337 = vld [vmem:[%s692] sm:$0x1]
        %v1339 = vlaneseq
        %v1340 = vshrl.u32 %v1339, 7
        %v1341 = vsub.s32 0, %v1340
        %v1342 = vrot.slane %v1337, %v1341
        %v1348 = vunpack.c.l.b16 %v1333
        %v1349 = vunpack.c.l.b16 %v1334
        %v1350 = vunpack.c.l.b16 %v1335
        %v1351 = vunpack.c.l.b16 %v1336
        %v1352 = vpack.c.b16 %v1349, %v1348
        %v1353 = vpack.c.b16 %v1351, %v1350
        %v1357 = vsel %vm816, %v1332, 0
        %1359 = vmatprep.subr.bf16.mxu0 0
        %1360 = vmatpush1.bf16.msra.mxu0 %v1352
        %1361 = vmatprep.subr.bf16.mxu0 0
        %1362 = vmatpush1.bf16.msra.mxu0 %v1353
        %1363 = vmatprep.subr.bf16.mxu0 0
        %1364 = vmatpush1.bf16.msra.mxu0 0
        %1365 = vmatprep.subr.bf16.mxu0 0
        %1366 = vmatpush1.bf16.msra.mxu0 0
        %1367 = vmatprep.subr.bf16.mxu0 0
        %1368 = vmatpush1.bf16.msra.mxu0 0
        %1369 = vmatprep.subr.bf16.mxu0 0
        %1370 = vmatpush1.bf16.msra.mxu0 0
        %1371 = vmatprep.subr.bf16.mxu0 0
        %1372 = vmatpush1.bf16.msra.mxu0 0
        %1373 = vmatprep.subr.bf16.mxu0 0
        %1374 = vmatpush1.bf16.msra.mxu0 0
        %1375 = vmatprep.subr.bf16.mxu0 0
        %1376 = vmatpush1.bf16.msra.mxu0 0
        %1377 = vmatprep.subr.bf16.mxu0 0
        %1378 = vmatpush1.bf16.msra.mxu0 0
        %1379 = vmatprep.subr.bf16.mxu0 0
        %1380 = vmatpush1.bf16.msra.mxu0 0
        %1381 = vmatprep.subr.bf16.mxu0 0
        %1382 = vmatpush1.bf16.msra.mxu0 0
        %1383 = vmatprep.subr.bf16.mxu0 0
        %1384 = vmatpush1.bf16.msra.mxu0 0
        %1385 = vmatprep.subr.bf16.mxu0 0
        %1386 = vmatpush1.bf16.msra.mxu0 0
        %1387 = vmatprep.subr.bf16.mxu0 0
        %1388 = vmatpush1.bf16.msra.mxu0 0
        %1389 = vmatprep.subr.bf16.mxu0 0
        %1390 = vmatpush1.bf16.msra.mxu0 0
        %1391 = vmatprep.mubr.bf16.mxu0 0
        %1392 = vmatmul.mubr.bf16.gmra.mrb[0].mxu0 %v1357
        %v1393 = vpop.f32.mrb[0].mxu0
        %v1394 = vadd.f32 %v1342, %v1393
        %v1395 = vpop.f32.mrb[0].mxu0
        %v1396 = vpop.f32.mrb[0].mxu0
        %v1397 = vpop.f32.mrb[0].mxu0
        %1398 = vdwg.mxu0
        %v1399 = vadd.f32 %v791, %v1394
        %v1400 = vsel %vm816, %v1399, 0.0
        %1401 = vadd.xlane.f32.xlu0 %v1400
        %v1402 = vpop.xlane.xlu0 %1401
        %v1403 = vrcp.pop 32.0
        %v1404 = vmul.f32 %v1402, %v1403
        %v1405 = vsub.f32 %v1399, %v1404
        %v1406 = vmul.f32 %v1405, %v1405
        %v1407 = vsel %vm816, %v1406, 0.0
        %1408 = vadd.xlane.f32.xlu0 %v1407
        %v1409 = vpop.xlane.xlu0 %1408
        %v1410 = vmul.f32 %v1409, %v1403
        %v1411 = vadd.f32 %v1410, 1e-05
        %v1412 = vrsqrt.pop %v1411
        %v1413 = vmul.f32 %v1405, %v1412
        %v1414 = vld [vmem:[%s695] sm:$0x1]
        %v1416 = vlaneseq
        %v1417 = vshrl.u32 %v1416, 7
        %v1418 = vsub.s32 0, %v1417
        %v1419 = vrot.slane %v1414, %v1418
        %v1421 = vmul.f32 %v1413, %v1419
        %v1422 = vld [vmem:[%s698] sm:$0x1]
        %v1424 = vlaneseq
        %v1425 = vshrl.u32 %v1424, 7
        %v1426 = vsub.s32 0, %v1425
        %v1427 = vrot.slane %v1422, %v1426
        %v1429 = vadd.f32 %v1421, %v1427
        %v1430 = vpack.c.bf16 %v1429, %v1429
        %v1431 = vld [vmem:[%s703] sm:$0xf]
        %v1432 = vld [vmem:[%s703 + $0x4] sm:$0xf]
        %v1433 = vld [vmem:[%s703 + $0x8] sm:$0xf]
        %v1434 = vld [vmem:[%s703 + $0xc] sm:$0xf]
        %v1435 = vld [vmem:[%s706] sm:$0x1]
        %v1437 = vlaneseq
        %v1438 = vshrl.u32 %v1437, 7
        %v1439 = vsub.s32 0, %v1438
        %v1440 = vrot.slane %v1435, %v1439
        %v1446 = vunpack.c.l.b16 %v1431
        %v1447 = vunpack.c.l.b16 %v1432
        %v1448 = vunpack.c.l.b16 %v1433
        %v1449 = vunpack.c.l.b16 %v1434
        %v1450 = vpack.c.b16 %v1447, %v1446
        %v1451 = vpack.c.b16 %v1449, %v1448
        %v1455 = vsel %vm816, %v1430, 0
        %1457 = vmatprep.subr.bf16.mxu0 0
        %1458 = vmatpush1.bf16.msra.mxu0 %v1450
        %1459 = vmatprep.subr.bf16.mxu0 0
        %1460 = vmatpush1.bf16.msra.mxu0 %v1451
        %1461 = vmatprep.subr.bf16.mxu0 0
        %1462 = vmatpush1.bf16.msra.mxu0 0
        %1463 = vmatprep.subr.bf16.mxu0 0
        %1464 = vmatpush1.bf16.msra.mxu0 0
        %1465 = vmatprep.subr.bf16.mxu0 0
        %1466 = vmatpush1.bf16.msra.mxu0 0
        %1467 = vmatprep.subr.bf16.mxu0 0
        %1468 = vmatpush1.bf16.msra.mxu0 0
        %1469 = vmatprep.subr.bf16.mxu0 0
        %1470 = vmatpush1.bf16.msra.mxu0 0
        %1471 = vmatprep.subr.bf16.mxu0 0
        %1472 = vmatpush1.bf16.msra.mxu0 0
        %1473 = vmatprep.subr.bf16.mxu0 0
        %1474 = vmatpush1.bf16.msra.mxu0 0
        %1475 = vmatprep.subr.bf16.mxu0 0
        %1476 = vmatpush1.bf16.msra.mxu0 0
        %1477 = vmatprep.subr.bf16.mxu0 0
        %1478 = vmatpush1.bf16.msra.mxu0 0
        %1479 = vmatprep.subr.bf16.mxu0 0
        %1480 = vmatpush1.bf16.msra.mxu0 0
        %1481 = vmatprep.subr.bf16.mxu0 0
        %1482 = vmatpush1.bf16.msra.mxu0 0
        %1483 = vmatprep.subr.bf16.mxu0 0
        %1484 = vmatpush1.bf16.msra.mxu0 0
        %1485 = vmatprep.subr.bf16.mxu0 0
        %1486 = vmatpush1.bf16.msra.mxu0 0
        %1487 = vmatprep.subr.bf16.mxu0 0
        %1488 = vmatpush1.bf16.msra.mxu0 0
        %1489 = vmatprep.mubr.bf16.mxu0 0
        %1490 = vmatmul.mubr.bf16.gmra.mrb[0].mxu0 %v1455
        %v1491 = vpop.f32.mrb[0].mxu0
        %v1492 = vadd.f32 %v1440, %v1491
        %v1493 = vpop.f32.mrb[0].mxu0
        %v1494 = vpop.f32.mrb[0].mxu0
        %v1495 = vpop.f32.mrb[0].mxu0
        %1496 = vdwg.mxu0
        %v1497 = vmax.f32 %v1492, 0.0
        %v1498 = vpack.c.bf16 %v1497, %v1497
        %v1499 = vld [vmem:[%s711] sm:$0xf]
        %v1500 = vld [vmem:[%s711 + $0x4] sm:$0xf]
        %v1501 = vld [vmem:[%s711 + $0x8] sm:$0xf]
        %v1502 = vld [vmem:[%s711 + $0xc] sm:$0xf]
        %v1503 = vld [vmem:[%s711 + $0x10] sm:$0xf]
        %v1504 = vld [vmem:[%s711 + $0x14] sm:$0xf]
        %v1505 = vld [vmem:[%s711 + $0x18] sm:$0xf]
        %v1506 = vld [vmem:[%s711 + $0x1c] sm:$0xf]
        %v1507 = vld [vmem:[%s714] sm:$0x1]
        %v1509 = vlaneseq
        %v1510 = vshrl.u32 %v1509, 7
        %v1511 = vsub.s32 0, %v1510
        %v1512 = vrot.slane %v1507, %v1511
        %v1522 = vunpack.c.l.b16 %v1499
        %v1523 = vunpack.c.l.b16 %v1500
        %v1524 = vunpack.c.l.b16 %v1501
        %v1525 = vunpack.c.l.b16 %v1502
        %v1526 = vunpack.c.l.b16 %v1503
        %v1527 = vunpack.c.l.b16 %v1504
        %v1528 = vunpack.c.l.b16 %v1505
        %v1529 = vunpack.c.l.b16 %v1506
        %v1530 = vpack.c.b16 %v1523, %v1522
        %v1531 = vpack.c.b16 %v1525, %v1524
        %v1532 = vpack.c.b16 %v1527, %v1526
        %v1533 = vpack.c.b16 %v1529, %v1528
        %vm1538 = vcmask 523264
        %v1540 = vsel %vm1538, %v1498, 0
        %1542 = vmatprep.subr.bf16.mxu0 0
        %1543 = vmatpush1.bf16.msra.mxu0 %v1530
        %1544 = vmatprep.subr.bf16.mxu0 0
        %1545 = vmatpush1.bf16.msra.mxu0 %v1531
        %1546 = vmatprep.subr.bf16.mxu0 0
        %1547 = vmatpush1.bf16.msra.mxu0 %v1532
        %1548 = vmatprep.subr.bf16.mxu0 0
        %1549 = vmatpush1.bf16.msra.mxu0 %v1533
        %1550 = vmatprep.subr.bf16.mxu0 0
        %1551 = vmatpush1.bf16.msra.mxu0 0
        %1552 = vmatprep.subr.bf16.mxu0 0
        %1553 = vmatpush1.bf16.msra.mxu0 0
        %1554 = vmatprep.subr.bf16.mxu0 0
        %1555 = vmatpush1.bf16.msra.mxu0 0
        %1556 = vmatprep.subr.bf16.mxu0 0
        %1557 = vmatpush1.bf16.msra.mxu0 0
        %1558 = vmatprep.subr.bf16.mxu0 0
        %1559 = vmatpush1.bf16.msra.mxu0 0
        %1560 = vmatprep.subr.bf16.mxu0 0
        %1561 = vmatpush1.bf16.msra.mxu0 0
        %1562 = vmatprep.subr.bf16.mxu0 0
        %1563 = vmatpush1.bf16.msra.mxu0 0
        %1564 = vmatprep.subr.bf16.mxu0 0
        %1565 = vmatpush1.bf16.msra.mxu0 0
        %1566 = vmatprep.subr.bf16.mxu0 0
        %1567 = vmatpush1.bf16.msra.mxu0 0
        %1568 = vmatprep.subr.bf16.mxu0 0
        %1569 = vmatpush1.bf16.msra.mxu0 0
        %1570 = vmatprep.subr.bf16.mxu0 0
        %1571 = vmatpush1.bf16.msra.mxu0 0
        %1572 = vmatprep.subr.bf16.mxu0 0
        %1573 = vmatpush1.bf16.msra.mxu0 0
        %1574 = vmatprep.mubr.bf16.mxu0 0
        %1575 = vmatmul.mubr.bf16.gmra.mrb[0].mxu0 %v1540
        %v1576 = vpop.f32.mrb[0].mxu0
        %v1577 = vadd.f32 %v1512, %v1576
        %v1578 = vpop.f32.mrb[0].mxu0
        %v1579 = vpop.f32.mrb[0].mxu0
        %v1580 = vpop.f32.mrb[0].mxu0
        %1581 = vdwg.mxu0
        %v1582 = vadd.f32 %v1429, %v1577
        %v1583 = vsel %vm816, %v1582, 0.0
        %1584 = vadd.xlane.f32.xlu0 %v1583
        %v1585 = vpop.xlane.xlu0 %1584
        %v1586 = vmul.f32 %v1585, %v1403
        %v1587 = vsub.f32 %v1582, %v1586
        %v1588 = vmul.f32 %v1587, %v1587
        %v1589 = vsel %vm816, %v1588, 0.0
        %1590 = vadd.xlane.f32.xlu0 %v1589
        %v1591 = vpop.xlane.xlu0 %1590
        %v1592 = vmul.f32 %v1591, %v1403
        %v1593 = vadd.f32 %v1592, 1e-05
        %v1594 = vrsqrt.pop %v1593
        %v1595 = vmul.f32 %v1587, %v1594
        %v1596 = vld [vmem:[%s717] sm:$0x1]
        %v1598 = vlaneseq
        %v1599 = vshrl.u32 %v1598, 7
        %v1600 = vsub.s32 0, %v1599
        %v1601 = vrot.slane %v1596, %v1600
        %v1603 = vmul.f32 %v1595, %v1601
        %v1604 = vld [vmem:[%s720] sm:$0x1]
        %v1606 = vlaneseq
        %v1607 = vshrl.u32 %v1606, 7
        %v1608 = vsub.s32 0, %v1607
        %v1609 = vrot.slane %v1604, %v1608
        %v1611 = vadd.f32 %v1603, %v1609
        %1612 = vst.msk [vmem:[#allocation2] sm:$0xff] %vm816, %v1611
        %p1613 = scmp.eq.s32.totalorder %s35, 1
        // Predicated region
        $region89: #{backbone_forward.1} parent=83 // pred_check
          %p1614 = pneg %p1613
        $region90: #{backbone_forward.1} parent=83 // pred_check_branch
          %1616 = sbr.rel (%p1614) target = $region92
        $region91: #{backbone_forward.1} parent=83 // pred_region
          %1617 = vst.msk [vmem:[%s672] sm:$0xff] %vm816, %v1611
        $region92: #{backbone_forward.1} parent=83 // pred_fallthru
          _
        %s1618 = sand.u32 %s451, 1
        %s1619 = scalar_lea.sflag [#allocation5], %s1618
        %s1620 = sand.u32 %s451, 1
        %s1621 = smul.addr %s1620, 8
        %s1622 = scalar_lea.vmem [#allocation4], %s1621
        // Predicated region
        $region93: #{backbone_forward.1} parent=83 // pred_check
          %p1623 = pneg %p461
        $region94: #{backbone_forward.1} parent=83 // pred_check_branch
          %1625 = sbr.rel (%p1623) target = $region96
        $region95: #{backbone_forward.1} parent=83 // pred_region
          %s1627 = ssub.s32 128, 128
          %1628 = vsyncadd %s1619, %s1627
          %s1629 = smul.addr %s34, 128
          %s1630 = scalar_lea.hbm %s16, %s1629
          %s1632 = sshll.u32 %s1622, 4
          %s1633 = int_to_ptr.vmem [resolvable:$true] %s1632
          %1635 = dma.vmem_to_hbm [thread:$0]  %s1633, 128, %s1630, %s1619
        $region96: #{backbone_forward.1} parent=83 // pred_fallthru
          _
      $region84: #{backbone_forward.1} parent=5 // pred_fallthru
        _
      %p1636 = scmp.le.s32.totalorder 2, %s25
      // Predicated region
      $region97: #{backbone_forward.1} parent=5 // pred_check
        %p1637 = pneg %p1636
      $region98: #{backbone_forward.1} parent=5 // pred_check_branch
        %1639 = sbr.rel (%p1637) target = $region100
      $region99: #{backbone_forward.1} parent=5 // pred_region
        %s1640 = ssub.s32 %s25, 2
        // Predicated region
        $region101: #{backbone_forward.1} parent=99 // pred_check
          %p1641 = pneg %p467
        $region102: #{backbone_forward.1} parent=99 // pred_check_branch
          %1643 = sbr.rel (%p1641) target = $region104
        $region103: #{backbone_forward.1} parent=99 // pred_region
          %s1644 = sand.u32 %s452, 1
          %s1645 = scalar_lea.sflag [#allocation5], %s1644
          %s1646 = sand.u32 %s452, 1
          %s1647 = smul.addr %s1646, 8
          %s1648 = scalar_lea.vmem [#allocation4], %s1647
          %1649 = dma.done %s1645, 128
        $region104: #{backbone_forward.1} parent=99 // pred_fallthru
          _
      $region100: #{backbone_forward.1} parent=5 // pred_fallthru
        _
    $region6: #{backbone_forward.1} parent=1 // loop_footer
      %s29 = sadd.s32 1, %s25
    $region7: #{backbone_forward.1} parent=1 // loop_footer_branch
      %24 = sbr.rel target = $region3
    $region8: #{backbone_forward.1} parent=1 // loop_exit
      _
    %1650 = vsyncpa [#allocation5], 1
    %s1651 = scalar_lea.sflag [#allocation5], 1
    %1652 = vsyncpa %s1651, 1

</llo_original>
